<compile_context>
chip_gen: v6e
topology: v6e:2x2x1
jax: 0.10.0
libtpu: 0.0.40
codegen_flags: <defaults>
</compile_context>

<pallas_src>
import functools

import jax
import jax.numpy as jnp
from jax.experimental import pallas as pl
from jax.experimental.pallas import tpu as pltpu

_HID = 512
_OUT = 10
_OUT_PAD = 128  # lane-dense padded fc4 output width


def _round_up(x, m):
    return (x + m - 1) // m * m


def _swish(x):
    # x * sigmoid(x); exp and (approx) reciprocal both go to the EUP slot.
    return x * pl.reciprocal(1.0 + jnp.exp(-x), approx=True)


def _text_decoder_kernel(z_ref,
                         w1_ref, b1_ref,
                         w2_ref, b2_ref,
                         w3_ref, b3_ref,
                         w4_ref, b4_ref,
                         o_ref):
    # fc1 + swish : bf16 operands, f32 accumulation; bias add + swish in f32.
    h = jnp.dot(z_ref[...], w1_ref[...], preferred_element_type=jnp.float32)
    h = _swish(h + b1_ref[...])
    # fc2 + swish
    h = jnp.dot(h.astype(jnp.bfloat16), w2_ref[...],
                preferred_element_type=jnp.float32)
    h = _swish(h + b2_ref[...])
    # fc3 + swish
    h = jnp.dot(h.astype(jnp.bfloat16), w3_ref[...],
                preferred_element_type=jnp.float32)
    h = _swish(h + b3_ref[...])
    # fc4 (no activation), lane-padded to 128 output columns
    out = jnp.dot(h.astype(jnp.bfloat16), w4_ref[...],
                  preferred_element_type=jnp.float32)
    o_ref[...] = (out + b4_ref[...]).astype(o_ref.dtype)


def init_params(key, n_latents):
    """Deterministic synthetic parameters (shapes match the nn.Linear layers), f32."""
    ks = jax.random.split(key, 8)

    def lin(kw, kb, fan_in, fan_out):
        bound = 1.0 / jnp.sqrt(fan_in)
        w = jax.random.uniform(kw, (fan_in, fan_out), jnp.float32, -bound, bound)
        b = jax.random.uniform(kb, (1, fan_out), jnp.float32, -bound, bound)
        return w, b

    w1, b1 = lin(ks[0], ks[1], n_latents, _HID)
    w2, b2 = lin(ks[2], ks[3], _HID, _HID)
    w3, b3 = lin(ks[4], ks[5], _HID, _HID)
    w4, b4 = lin(ks[6], ks[7], _HID, _OUT)
    return dict(w1=w1, b1=b1, w2=w2, b2=b2, w3=w3, b3=b3, w4=w4, b4=b4)


def prepare_params(params):
    """One-time conversion: weights -> bf16, fc4 lane-padded to 128 output cols."""
    w4 = params["w4"]
    b4 = params["b4"]
    w4p = jnp.zeros((w4.shape[0], _OUT_PAD), jnp.float32).at[:, :_OUT].set(w4)
    b4p = jnp.zeros((1, _OUT_PAD), jnp.float32).at[:, :_OUT].set(b4)
    return dict(
        w1=params["w1"].astype(jnp.bfloat16), b1=params["b1"].astype(jnp.float32),
        w2=params["w2"].astype(jnp.bfloat16), b2=params["b2"].astype(jnp.float32),
        w3=params["w3"].astype(jnp.bfloat16), b3=params["b3"].astype(jnp.float32),
        w4=w4p.astype(jnp.bfloat16), b4=b4p.astype(jnp.float32))


@functools.partial(jax.jit, static_argnames=("block_rows",))
def text_decoder(z, prepared, *, block_rows=256):
    """z: (B, n_latents) f32. prepared: output of prepare_params. Returns (B, 10) f32."""
    B, n_latents = z.shape
    # Batch tile: up to 256 rows (fills v6e/v7x MXU M dim), multiple of 8 sublanes.
    tb = _round_up(min(block_rows, B), 8)
    padded_b = _round_up(B, tb)

    zb = z.astype(jnp.bfloat16)
    if padded_b != B:
        zb = jnp.pad(zb, ((0, padded_b - B), (0, 0)))

    grid = (padded_b // tb,)
    const = lambda i: (0, 0)  # weights/biases VMEM-resident across batch tiles
    in_specs = [
        pl.BlockSpec((tb, n_latents), lambda i: (i, 0)),
        pl.BlockSpec((n_latents, _HID), const), pl.BlockSpec((1, _HID), const),
        pl.BlockSpec((_HID, _HID), const),      pl.BlockSpec((1, _HID), const),
        pl.BlockSpec((_HID, _HID), const),      pl.BlockSpec((1, _HID), const),
        pl.BlockSpec((_HID, _OUT_PAD), const),  pl.BlockSpec((1, _OUT_PAD), const),
    ]

    out = pl.pallas_call(
        _text_decoder_kernel,
        out_shape=jax.ShapeDtypeStruct((padded_b, _OUT_PAD), jnp.float32),
        grid=grid,
        in_specs=in_specs,
        out_specs=pl.BlockSpec((tb, _OUT_PAD), lambda i: (i, 0)),
        compiler_params=pltpu.CompilerParams(
            dimension_semantics=("parallel",),   # shard batch tiles over v7x's 2 TCs
            vmem_limit_bytes=32 * 1024 * 1024,   # well within v7x's 64 MiB VMEM
        ),
    )(zb,
      prepared["w1"], prepared["b1"],
      prepared["w2"], prepared["b2"],
      prepared["w3"], prepared["b3"],
      prepared["w4"], prepared["b4"])
    return out[:B, :_OUT]


def text_decoder_ref(z, p):
    """Pure-JAX f32 reference for correctness check."""
    def swish(x):
        return x * jax.nn.sigmoid(x)
    h = swish(z @ p["w1"] + p["b1"])
    h = swish(h @ p["w2"] + p["b2"])
    h = swish(h @ p["w3"] + p["b3"])
    return h @ p["w4"] + p["b4"]


if __name__ == "__main__":
    key = jax.random.PRNGKey(0)
    k_z, k_p = jax.random.split(key)

    n_latents = 32
    params = init_params(k_p, n_latents)
    prepared = prepare_params(params)

    # Multi-tile batch grid: 24 rows with 8-row tiles -> grid (3,), resident weights.
    z = jax.random.normal(k_z, (24, n_latents), jnp.float32)
    out = jax.block_until_ready(text_decoder(z, prepared, block_rows=8))
    ref = text_decoder_ref(z, params)
    assert out.shape == (24, _OUT)
    # bf16 weights + approx reciprocal -> loosened tolerance vs f32 reference.
    assert jnp.allclose(out, ref, atol=5e-2, rtol=5e-2), "mismatch vs reference (24-row)"

    # Ragged batch (13 rows) with default tile size -> pads to 16, grid (1,).
    z2 = jax.random.normal(k_z, (13, n_latents), jnp.float32)
    out2 = jax.block_until_ready(text_decoder(z2, prepared))
    ref2 = text_decoder_ref(z2, params)
    assert out2.shape == (13, _OUT)
    assert jnp.allclose(out2, ref2, atol=5e-2, rtol=5e-2), "mismatch vs reference (13-row)"

    print("KERNEL_OK")
</pallas_src>

<mosaic_0001>
module attributes {stable_mosaic.version = 11 : i64} {
  func.func @_text_decoder_kernel(%arg0: i32, %arg1: memref<8x32xbf16, #tpu.memory_space<vmem>>, %arg2: memref<32x512xbf16, #tpu.memory_space<vmem>>, %arg3: memref<1x512xf32, #tpu.memory_space<vmem>>, %arg4: memref<512x512xbf16, #tpu.memory_space<vmem>>, %arg5: memref<1x512xf32, #tpu.memory_space<vmem>>, %arg6: memref<512x512xbf16, #tpu.memory_space<vmem>>, %arg7: memref<1x512xf32, #tpu.memory_space<vmem>>, %arg8: memref<512x128xbf16, #tpu.memory_space<vmem>>, %arg9: memref<1x128xf32, #tpu.memory_space<vmem>>, %arg10: memref<8x128xf32, #tpu.memory_space<vmem>>) attributes {dimension_semantics = [#tpu.dimension_semantics<parallel>], iteration_bounds = array<i64: 3>, scalar_prefetch = 0 : i64, scratch_operands = 0 : i64, tpu.core_type = #tpu.core_type<tc>, window_params = [{transform_indices = @transform_0, window_bounds = array<i64: 8, 32>}, {pipeline_mode = #tpu.pipeline_mode<synchronous>, transform_indices = @transform_1, window_bounds = array<i64: 32, 512>}, {pipeline_mode = #tpu.pipeline_mode<synchronous>, transform_indices = @transform_2, window_bounds = array<i64: 1, 512>}, {pipeline_mode = #tpu.pipeline_mode<synchronous>, transform_indices = @transform_3, window_bounds = array<i64: 512, 512>}, {pipeline_mode = #tpu.pipeline_mode<synchronous>, transform_indices = @transform_4, window_bounds = array<i64: 1, 512>}, {pipeline_mode = #tpu.pipeline_mode<synchronous>, transform_indices = @transform_5, window_bounds = array<i64: 512, 512>}, {pipeline_mode = #tpu.pipeline_mode<synchronous>, transform_indices = @transform_6, window_bounds = array<i64: 1, 512>}, {pipeline_mode = #tpu.pipeline_mode<synchronous>, transform_indices = @transform_7, window_bounds = array<i64: 512, 128>}, {pipeline_mode = #tpu.pipeline_mode<synchronous>, transform_indices = @transform_8, window_bounds = array<i64: 1, 128>}, {transform_indices = @transform_9, window_bounds = array<i64: 8, 128>}]} {
    %c0 = arith.constant 0 : index
    %c0_0 = arith.constant 0 : index
    %0 = vector.load %arg1[%c0, %c0_0] : memref<8x32xbf16, #tpu.memory_space<vmem>>, vector<8x32xbf16>
    %c0_1 = arith.constant 0 : index
    %c0_2 = arith.constant 0 : index
    %1 = vector.load %arg2[%c0_1, %c0_2] : memref<32x512xbf16, #tpu.memory_space<vmem>>, vector<32x512xbf16>
    %cst = arith.constant dense<0.000000e+00> : vector<8x512xf32>
    %2 = tpu.matmul %0, %1, %cst {dimension_numbers = #tpu.dot_dimension_numbers<[1], [0], [0], [1], [0, 0, 1, 1], [], []>} : vector<8x32xbf16>, vector<32x512xbf16>, vector<8x512xf32> -> vector<8x512xf32>
    %c0_3 = arith.constant 0 : index
    %c0_4 = arith.constant 0 : index
    %3 = vector.load %arg3[%c0_3, %c0_4] : memref<1x512xf32, #tpu.memory_space<vmem>>, vector<1x512xf32>
    %4 = vector.broadcast %3 : vector<1x512xf32> to vector<8x512xf32>
    %5 = arith.addf %2, %4 : vector<8x512xf32>
    %cst_5 = arith.constant 0.000000e+00 : f32
    %6 = vector.broadcast %cst_5 : f32 to vector<8x512xf32>
    %7 = arith.subf %6, %5 : vector<8x512xf32>
    %8 = math.exp %7 : vector<8x512xf32>
    %cst_6 = arith.constant 1.000000e+00 : f32
    %9 = vector.broadcast %cst_6 : f32 to vector<8x512xf32>
    %10 = arith.addf %9, %8 : vector<8x512xf32>
    %11 = tpu.reciprocal %10 {approx = true} : vector<8x512xf32> -> vector<8x512xf32>
    %12 = arith.mulf %5, %11 : vector<8x512xf32>
    %13 = arith.truncf %12 : vector<8x512xf32> to vector<8x512xbf16>
    %c0_7 = arith.constant 0 : index
    %c0_8 = arith.constant 0 : index
    %14 = vector.load %arg4[%c0_7, %c0_8] : memref<512x512xbf16, #tpu.memory_space<vmem>>, vector<512x512xbf16>
    %cst_9 = arith.constant dense<0.000000e+00> : vector<8x512xf32>
    %15 = tpu.matmul %13, %14, %cst_9 {dimension_numbers = #tpu.dot_dimension_numbers<[1], [0], [0], [1], [0, 0, 1, 1], [], []>} : vector<8x512xbf16>, vector<512x512xbf16>, vector<8x512xf32> -> vector<8x512xf32>
    %c0_10 = arith.constant 0 : index
    %c0_11 = arith.constant 0 : index
    %16 = vector.load %arg5[%c0_10, %c0_11] : memref<1x512xf32, #tpu.memory_space<vmem>>, vector<1x512xf32>
    %17 = vector.broadcast %16 : vector<1x512xf32> to vector<8x512xf32>
    %18 = arith.addf %15, %17 : vector<8x512xf32>
    %cst_12 = arith.constant 0.000000e+00 : f32
    %19 = vector.broadcast %cst_12 : f32 to vector<8x512xf32>
    %20 = arith.subf %19, %18 : vector<8x512xf32>
    %21 = math.exp %20 : vector<8x512xf32>
    %cst_13 = arith.constant 1.000000e+00 : f32
    %22 = vector.broadcast %cst_13 : f32 to vector<8x512xf32>
    %23 = arith.addf %22, %21 : vector<8x512xf32>
    %24 = tpu.reciprocal %23 {approx = true} : vector<8x512xf32> -> vector<8x512xf32>
    %25 = arith.mulf %18, %24 : vector<8x512xf32>
    %26 = arith.truncf %25 : vector<8x512xf32> to vector<8x512xbf16>
    %c0_14 = arith.constant 0 : index
    %c0_15 = arith.constant 0 : index
    %27 = vector.load %arg6[%c0_14, %c0_15] : memref<512x512xbf16, #tpu.memory_space<vmem>>, vector<512x512xbf16>
    %cst_16 = arith.constant dense<0.000000e+00> : vector<8x512xf32>
    %28 = tpu.matmul %26, %27, %cst_16 {dimension_numbers = #tpu.dot_dimension_numbers<[1], [0], [0], [1], [0, 0, 1, 1], [], []>} : vector<8x512xbf16>, vector<512x512xbf16>, vector<8x512xf32> -> vector<8x512xf32>
    %c0_17 = arith.constant 0 : index
    %c0_18 = arith.constant 0 : index
    %29 = vector.load %arg7[%c0_17, %c0_18] : memref<1x512xf32, #tpu.memory_space<vmem>>, vector<1x512xf32>
    %30 = vector.broadcast %29 : vector<1x512xf32> to vector<8x512xf32>
    %31 = arith.addf %28, %30 : vector<8x512xf32>
    %cst_19 = arith.constant 0.000000e+00 : f32
    %32 = vector.broadcast %cst_19 : f32 to vector<8x512xf32>
    %33 = arith.subf %32, %31 : vector<8x512xf32>
    %34 = math.exp %33 : vector<8x512xf32>
    %cst_20 = arith.constant 1.000000e+00 : f32
    %35 = vector.broadcast %cst_20 : f32 to vector<8x512xf32>
    %36 = arith.addf %35, %34 : vector<8x512xf32>
    %37 = tpu.reciprocal %36 {approx = true} : vector<8x512xf32> -> vector<8x512xf32>
    %38 = arith.mulf %31, %37 : vector<8x512xf32>
    %39 = arith.truncf %38 : vector<8x512xf32> to vector<8x512xbf16>
    %c0_21 = arith.constant 0 : index
    %c0_22 = arith.constant 0 : index
    %40 = vector.load %arg8[%c0_21, %c0_22] : memref<512x128xbf16, #tpu.memory_space<vmem>>, vector<512x128xbf16>
    %cst_23 = arith.constant dense<0.000000e+00> : vector<8x128xf32>
    %41 = tpu.matmul %39, %40, %cst_23 {dimension_numbers = #tpu.dot_dimension_numbers<[1], [0], [0], [1], [0, 0, 1, 1], [], []>} : vector<8x512xbf16>, vector<512x128xbf16>, vector<8x128xf32> -> vector<8x128xf32>
    %c0_24 = arith.constant 0 : index
    %c0_25 = arith.constant 0 : index
    %42 = vector.load %arg9[%c0_24, %c0_25] : memref<1x128xf32, #tpu.memory_space<vmem>>, vector<1x128xf32>
    %43 = vector.broadcast %42 : vector<1x128xf32> to vector<8x128xf32>
    %44 = arith.addf %41, %43 : vector<8x128xf32>
    %c0_26 = arith.constant 0 : index
    %c0_27 = arith.constant 0 : index
    %45 = vector.load %arg10[%c0_26, %c0_27] : memref<8x128xf32, #tpu.memory_space<vmem>>, vector<8x128xf32>
    tpu.vector_store %arg10[%c0_26, %c0_27], %44 {strides = array<i32>} : memref<8x128xf32, #tpu.memory_space<vmem>>, vector<8x128xf32>,
    return
  }
  func.func @transform_0(%arg0: i32) -> (i32, i32) {
    %c0_i32 = arith.constant 0 : i32
    %c0_i32_0 = arith.constant 0 : i32
    return %arg0, %c0_i32 : i32, i32
  }
  func.func @transform_1(%arg0: i32) -> (i32, i32) {
    %c0_i32 = arith.constant 0 : i32
    %c0_i32_0 = arith.constant 0 : i32
    %c0_i32_1 = arith.constant 0 : i32
    return %c0_i32, %c0_i32_0 : i32, i32
  }
  func.func @transform_2(%arg0: i32) -> (i32, i32) {
    %c0_i32 = arith.constant 0 : i32
    %c0_i32_0 = arith.constant 0 : i32
    %c0_i32_1 = arith.constant 0 : i32
    return %c0_i32, %c0_i32_0 : i32, i32
  }
  func.func @transform_3(%arg0: i32) -> (i32, i32) {
    %c0_i32 = arith.constant 0 : i32
    %c0_i32_0 = arith.constant 0 : i32
    %c0_i32_1 = arith.constant 0 : i32
    return %c0_i32, %c0_i32_0 : i32, i32
  }
  func.func @transform_4(%arg0: i32) -> (i32, i32) {
    %c0_i32 = arith.constant 0 : i32
    %c0_i32_0 = arith.constant 0 : i32
    %c0_i32_1 = arith.constant 0 : i32
    return %c0_i32, %c0_i32_0 : i32, i32
  }
  func.func @transform_5(%arg0: i32) -> (i32, i32) {
    %c0_i32 = arith.constant 0 : i32
    %c0_i32_0 = arith.constant 0 : i32
    %c0_i32_1 = arith.constant 0 : i32
    return %c0_i32, %c0_i32_0 : i32, i32
  }
  func.func @transform_6(%arg0: i32) -> (i32, i32) {
    %c0_i32 = arith.constant 0 : i32
    %c0_i32_0 = arith.constant 0 : i32
    %c0_i32_1 = arith.constant 0 : i32
    return %c0_i32, %c0_i32_0 : i32, i32
  }
  func.func @transform_7(%arg0: i32) -> (i32, i32) {
    %c0_i32 = arith.constant 0 : i32
    %c0_i32_0 = arith.constant 0 : i32
    %c0_i32_1 = arith.constant 0 : i32
    return %c0_i32, %c0_i32_0 : i32, i32
  }
  func.func @transform_8(%arg0: i32) -> (i32, i32) {
    %c0_i32 = arith.constant 0 : i32
    %c0_i32_0 = arith.constant 0 : i32
    %c0_i32_1 = arith.constant 0 : i32
    return %c0_i32, %c0_i32_0 : i32, i32
  }
  func.func @transform_9(%arg0: i32) -> (i32, i32) {
    %c0_i32 = arith.constant 0 : i32
    %c0_i32_0 = arith.constant 0 : i32
    return %arg0, %c0_i32 : i32, i32
  }
}

</mosaic_0001>

<llo_original>
// kernel: text_decoder.1
$region0: #{text_decoder.1}
  #allocation0 [shape = 'u32[]', space=smem, size = 0x4, offset = 0x4, fixed_abs, tag = 'smem constant byte address 0x4 - core index']
  #allocation1 [shape = 'u32[144,128]{1,0:T(1,128)}', space=vmem, size = 0x12000, scoped, tag = 'internal scratch']
  %s0 = inlined_call_operand.vmem [shape: bf16[24,32], index: 0, kind: input, shape index: {}]
  %s1 = inlined_call_operand.hbm [shape: bf16[32,512], index: 1, kind: input, shape index: {}]
  %s2 = inlined_call_operand.vmem [shape: f32[1,512], index: 2, kind: input, shape index: {}]
  %s3 = inlined_call_operand.hbm [shape: bf16[512,512], index: 3, kind: input, shape index: {}]
  %s4 = inlined_call_operand.vmem [shape: f32[1,512], index: 4, kind: input, shape index: {}]
  %s5 = inlined_call_operand.hbm [shape: bf16[512,512], index: 5, kind: input, shape index: {}]
  %s6 = inlined_call_operand.vmem [shape: f32[1,512], index: 6, kind: input, shape index: {}]
  %s7 = inlined_call_operand.hbm [shape: bf16[512,128], index: 7, kind: input, shape index: {}]
  %s8 = inlined_call_operand.vmem [shape: f32[1,128], index: 8, kind: input, shape index: {}]
  %s9 = inlined_call_operand.vmem [shape: f32[24,128], index: 9, kind: output, shape index: {}]
  %s10 = sld [smem:[#allocation0]]
  $region85: #{text_decoder.1} parent=0
    _
  %s12 = ssub.s32 1, %s10
  %s13 = scalar_select 0, %s12, %s10
  $region1: #{text_decoder.1} parent=0
    #allocation2 [shape = 'u8[32768]{0}', space=vmem, size = 0x8000, scoped, tag = 'input window, operand 1, single buffered']
    #allocation3 [shape = 's32[2]{0}', space=sflag, size = 0x8, scoped, tag = 'scoped memory for text_decoder.1']
    #allocation4 [shape = 'u8[524288]{0}', space=vmem, size = 0x80000, scoped, tag = 'input window, operand 3, single buffered']
    #allocation5 [shape = 's32[1]{0}', space=sflag, size = 0x4, scoped, tag = 'scoped memory for text_decoder.1']
    #allocation6 [shape = 'u8[524288]{0}', space=vmem, size = 0x80000, scoped, tag = 'input window, operand 5, single buffered']
    #allocation7 [shape = 'u8[131072]{0}', space=vmem, size = 0x20000, scoped, tag = 'input window, operand 7, single buffered']
    #allocation8 [shape = 's32[1]{0}', space=sflag, size = 0x4, scoped, tag = 'scoped memory for text_decoder.1']
    %14 = vsyncpa [#allocation3], 0
    %15 = vsyncpa [#allocation5], 0
    %16 = vsyncpa [#allocation8], 0
    loop: start=0, step=1, limit=5
    $region2: #{text_decoder.1} parent=1 // loop_pre_header
      _
    $region3: #{text_decoder.1} parent=1 // loop_header
      %s18 = sphi 0, %s22
      %p19 = scmp.ge.s32.totalorder %s18, 5
      %s28 = sphi 0, %s30
      %s31 = sphi 0, %s28
      %s32 = sphi 0, %s31
      %s48 = sphi 0, %s32
      %s52 = sphi 0, %s52
      %s54 = sphi 0, %s52
      %s55 = sphi 0, %s54
      %s69 = sphi 0, %s55
      %s73 = sphi 0, %s73
      %s75 = sphi 0, %s73
      %s76 = sphi 0, %s75
      %s90 = sphi 0, %s76
      %s94 = sphi 0, %s94
      %s96 = sphi 0, %s94
      %s97 = sphi 0, %s96
      %s111 = sphi 0, %s97
      %s115 = sphi 0, %s115
      %s117 = sphi 0, %s115
      %s118 = sphi 0, %s117
      %s132 = sphi 0, %s118
      %s136 = sphi 0, %s136
      %s138 = sphi 0, %s136
      %s139 = sphi 0, %s138
      %s153 = sphi 0, %s139
      %s157 = sphi 0, %s157
      %s159 = sphi 0, %s157
      %s160 = sphi 0, %s159
      %s174 = sphi 0, %s160
      %s178 = sphi 0, %s178
      %s180 = sphi 0, %s178
      %s181 = sphi 0, %s180
      %s195 = sphi 0, %s181
      %s199 = sphi 0, %s199
      %s201 = sphi 0, %s199
      %s202 = sphi 0, %s201
      %s216 = sphi 0, %s202
      %s222 = sphi 0, %s224
      %s225 = sphi 0, %s222
      %s226 = sphi 0, %s225
      %s242 = sphi 0, %s226
    $region4: #{text_decoder.1} parent=1 // loop_header_branch
      %21 = sbr.rel (%p19) target = $region8
    $region5: #{text_decoder.1} parent=1 // loop_body
      %s23 = ssub.s32 %s18, 1
      %s24 = ssub.s32 %s18, 2
      %s25 = sadd.s32 %s18, 1
      %s26 = ssub.s32 %s18, %s25
      %p27 = scmp.eq.s32.totalorder %s26, 0
      %s29 = sadd.s32 %s28, 1
      %s30 = scalar_select %p27, %s28, %s29
      %p33 = pneg %p27
      %p34 = scmp.eq.s32.totalorder %s18, 2
      %p35 = por %p33, %p34
      %p36 = scmp.ne.s32.totalorder %s28, %s31
      %p37 = scmp.eq.s32.totalorder %s18, 0
      %p38 = por %p36, %p37
      %p39 = scmp.ne.s32.totalorder %s28, %s31
      %p40 = scmp.eq.s32.totalorder %s23, 2
      %p41 = por %p39, %p40
      %p42 = scmp.ne.s32.totalorder %s31, %s32
      %p43 = scmp.eq.s32.totalorder %s23, 0
      %p44 = por %p42, %p43
      %p45 = scmp.ne.s32.totalorder %s31, %s32
      %p46 = scmp.eq.s32.totalorder %s24, 2
      %p47 = por %p45, %p46
      %p49 = scmp.ne.s32.totalorder %s32, %s48
      %p50 = scmp.eq.s32.totalorder %s24, 0
      %p51 = por %p49, %p50
      %s53 = sadd.s32 %s52, 1
      %p56 = scmp.eq.s32.totalorder %s18, 2
      %p57 = scmp.ne.s32.totalorder %s52, %s54
      %p58 = scmp.eq.s32.totalorder %s18, 0
      %p59 = por %p57, %p58
      %p60 = scmp.ne.s32.totalorder %s52, %s54
      %p61 = scmp.eq.s32.totalorder %s23, 2
      %p62 = por %p60, %p61
      %p63 = scmp.ne.s32.totalorder %s54, %s55
      %p64 = scmp.eq.s32.totalorder %s23, 0
      %p65 = por %p63, %p64
      %p66 = scmp.ne.s32.totalorder %s54, %s55
      %p67 = scmp.eq.s32.totalorder %s24, 2
      %p68 = por %p66, %p67
      %p70 = scmp.ne.s32.totalorder %s55, %s69
      %p71 = scmp.eq.s32.totalorder %s24, 0
      %p72 = por %p70, %p71
      %s74 = sadd.s32 %s73, 1
      %p77 = scmp.eq.s32.totalorder %s18, 2
      %p78 = scmp.ne.s32.totalorder %s73, %s75
      %p79 = scmp.eq.s32.totalorder %s18, 0
      %p80 = por %p78, %p79
      %p81 = scmp.ne.s32.totalorder %s73, %s75
      %p82 = scmp.eq.s32.totalorder %s23, 2
      %p83 = por %p81, %p82
      %p84 = scmp.ne.s32.totalorder %s75, %s76
      %p85 = scmp.eq.s32.totalorder %s23, 0
      %p86 = por %p84, %p85
      %p87 = scmp.ne.s32.totalorder %s75, %s76
      %p88 = scmp.eq.s32.totalorder %s24, 2
      %p89 = por %p87, %p88
      %p91 = scmp.ne.s32.totalorder %s76, %s90
      %p92 = scmp.eq.s32.totalorder %s24, 0
      %p93 = por %p91, %p92
      %s95 = sadd.s32 %s94, 1
      %p98 = scmp.eq.s32.totalorder %s18, 2
      %p99 = scmp.ne.s32.totalorder %s94, %s96
      %p100 = scmp.eq.s32.totalorder %s18, 0
      %p101 = por %p99, %p100
      %p102 = scmp.ne.s32.totalorder %s94, %s96
      %p103 = scmp.eq.s32.totalorder %s23, 2
      %p104 = por %p102, %p103
      %p105 = scmp.ne.s32.totalorder %s96, %s97
      %p106 = scmp.eq.s32.totalorder %s23, 0
      %p107 = por %p105, %p106
      %p108 = scmp.ne.s32.totalorder %s96, %s97
      %p109 = scmp.eq.s32.totalorder %s24, 2
      %p110 = por %p108, %p109
      %p112 = scmp.ne.s32.totalorder %s97, %s111
      %p113 = scmp.eq.s32.totalorder %s24, 0
      %p114 = por %p112, %p113
      %s116 = sadd.s32 %s115, 1
      %p119 = scmp.eq.s32.totalorder %s18, 2
      %p120 = scmp.ne.s32.totalorder %s115, %s117
      %p121 = scmp.eq.s32.totalorder %s18, 0
      %p122 = por %p120, %p121
      %p123 = scmp.ne.s32.totalorder %s115, %s117
      %p124 = scmp.eq.s32.totalorder %s23, 2
      %p125 = por %p123, %p124
      %p126 = scmp.ne.s32.totalorder %s117, %s118
      %p127 = scmp.eq.s32.totalorder %s23, 0
      %p128 = por %p126, %p127
      %p129 = scmp.ne.s32.totalorder %s117, %s118
      %p130 = scmp.eq.s32.totalorder %s24, 2
      %p131 = por %p129, %p130
      %p133 = scmp.ne.s32.totalorder %s118, %s132
      %p134 = scmp.eq.s32.totalorder %s24, 0
      %p135 = por %p133, %p134
      %s137 = sadd.s32 %s136, 1
      %p140 = scmp.eq.s32.totalorder %s18, 2
      %p141 = scmp.ne.s32.totalorder %s136, %s138
      %p142 = scmp.eq.s32.totalorder %s18, 0
      %p143 = por %p141, %p142
      %p144 = scmp.ne.s32.totalorder %s136, %s138
      %p145 = scmp.eq.s32.totalorder %s23, 2
      %p146 = por %p144, %p145
      %p147 = scmp.ne.s32.totalorder %s138, %s139
      %p148 = scmp.eq.s32.totalorder %s23, 0
      %p149 = por %p147, %p148
      %p150 = scmp.ne.s32.totalorder %s138, %s139
      %p151 = scmp.eq.s32.totalorder %s24, 2
      %p152 = por %p150, %p151
      %p154 = scmp.ne.s32.totalorder %s139, %s153
      %p155 = scmp.eq.s32.totalorder %s24, 0
      %p156 = por %p154, %p155
      %s158 = sadd.s32 %s157, 1
      %p161 = scmp.eq.s32.totalorder %s18, 2
      %p162 = scmp.ne.s32.totalorder %s157, %s159
      %p163 = scmp.eq.s32.totalorder %s18, 0
      %p164 = por %p162, %p163
      %p165 = scmp.ne.s32.totalorder %s157, %s159
      %p166 = scmp.eq.s32.totalorder %s23, 2
      %p167 = por %p165, %p166
      %p168 = scmp.ne.s32.totalorder %s159, %s160
      %p169 = scmp.eq.s32.totalorder %s23, 0
      %p170 = por %p168, %p169
      %p171 = scmp.ne.s32.totalorder %s159, %s160
      %p172 = scmp.eq.s32.totalorder %s24, 2
      %p173 = por %p171, %p172
      %p175 = scmp.ne.s32.totalorder %s160, %s174
      %p176 = scmp.eq.s32.totalorder %s24, 0
      %p177 = por %p175, %p176
      %s179 = sadd.s32 %s178, 1
      %p182 = scmp.eq.s32.totalorder %s18, 2
      %p183 = scmp.ne.s32.totalorder %s178, %s180
      %p184 = scmp.eq.s32.totalorder %s18, 0
      %p185 = por %p183, %p184
      %p186 = scmp.ne.s32.totalorder %s178, %s180
      %p187 = scmp.eq.s32.totalorder %s23, 2
      %p188 = por %p186, %p187
      %p189 = scmp.ne.s32.totalorder %s180, %s181
      %p190 = scmp.eq.s32.totalorder %s23, 0
      %p191 = por %p189, %p190
      %p192 = scmp.ne.s32.totalorder %s180, %s181
      %p193 = scmp.eq.s32.totalorder %s24, 2
      %p194 = por %p192, %p193
      %p196 = scmp.ne.s32.totalorder %s181, %s195
      %p197 = scmp.eq.s32.totalorder %s24, 0
      %p198 = por %p196, %p197
      %s200 = sadd.s32 %s199, 1
      %p203 = scmp.eq.s32.totalorder %s18, 2
      %p204 = scmp.ne.s32.totalorder %s199, %s201
      %p205 = scmp.eq.s32.totalorder %s18, 0
      %p206 = por %p204, %p205
      %p207 = scmp.ne.s32.totalorder %s199, %s201
      %p208 = scmp.eq.s32.totalorder %s23, 2
      %p209 = por %p207, %p208
      %p210 = scmp.ne.s32.totalorder %s201, %s202
      %p211 = scmp.eq.s32.totalorder %s23, 0
      %p212 = por %p210, %p211
      %p213 = scmp.ne.s32.totalorder %s201, %s202
      %p214 = scmp.eq.s32.totalorder %s24, 2
      %p215 = por %p213, %p214
      %p217 = scmp.ne.s32.totalorder %s202, %s216
      %p218 = scmp.eq.s32.totalorder %s24, 0
      %p219 = por %p217, %p218
      %s220 = ssub.s32 %s18, %s25
      %p221 = scmp.eq.s32.totalorder %s220, 0
      %s223 = sadd.s32 %s222, 1
      %s224 = scalar_select %p221, %s222, %s223
      %p227 = pneg %p221
      %p228 = scmp.eq.s32.totalorder %s18, 2
      %p229 = por %p227, %p228
      %p230 = scmp.ne.s32.totalorder %s222, %s225
      %p231 = scmp.eq.s32.totalorder %s18, 0
      %p232 = por %p230, %p231
      %p233 = scmp.ne.s32.totalorder %s222, %s225
      %p234 = scmp.eq.s32.totalorder %s23, 2
      %p235 = por %p233, %p234
      %p236 = scmp.ne.s32.totalorder %s225, %s226
      %p237 = scmp.eq.s32.totalorder %s23, 0
      %p238 = por %p236, %p237
      %p239 = scmp.ne.s32.totalorder %s225, %s226
      %p240 = scmp.eq.s32.totalorder %s24, 2
      %p241 = por %p239, %p240
      %p243 = scmp.ne.s32.totalorder %s226, %s242
      %p244 = scmp.eq.s32.totalorder %s24, 0
      %p245 = por %p243, %p244
      %p246 = scmp.le.s32.totalorder 1, %s18
      %p247 = scmp.lt.s32.totalorder %s18, 4
      %p248 = pnand %p246, %p247
      %p249 = pneg %p248
      // Predicated region
      $region9: #{text_decoder.1} parent=5 // pred_check
        _
      $region10: #{text_decoder.1} parent=5 // pred_check_branch
        %251 = sbr.rel (%p248) target = $region12
      $region11: #{text_decoder.1} parent=5 // pred_region
        %s252 = ssub.s32 %s18, 1
        // Predicated region
        $region13: #{text_decoder.1} parent=11 // pred_check
          %p253 = pneg %p65
        $region14: #{text_decoder.1} parent=11 // pred_check_branch
          %255 = sbr.rel (%p253) target = $region16
        $region15: #{text_decoder.1} parent=11 // pred_region
          %s257 = ssub.s32 1024, 1024
          %258 = vsyncadd [#allocation3], %s257
          %s259 = sshll.u32 [#allocation2], 4
          %s260 = int_to_ptr.vmem [resolvable:$true] %s259
          %265 = dma.hbm_to_vmem [thread:$0]  %s1, 1024, %s260, [#allocation3], 256, 256, 16
        $region16: #{text_decoder.1} parent=11 // pred_fallthru
          _
        // Predicated region
        $region17: #{text_decoder.1} parent=11 // pred_check
          %p266 = pneg %p86
        $region18: #{text_decoder.1} parent=11 // pred_check_branch
          %268 = sbr.rel (%p266) target = $region20
        $region19: #{text_decoder.1} parent=11 // pred_region
          _
        $region20: #{text_decoder.1} parent=11 // pred_fallthru
          _
        // Predicated region
        $region21: #{text_decoder.1} parent=11 // pred_check
          %p269 = pneg %p107
        $region22: #{text_decoder.1} parent=11 // pred_check_branch
          %271 = sbr.rel (%p269) target = $region24
        $region23: #{text_decoder.1} parent=11 // pred_region
          %s273 = ssub.s32 16384, 16384
          %274 = vsyncadd [#allocation5], %s273
          %s275 = sshll.u32 [#allocation4], 4
          %s276 = int_to_ptr.vmem [resolvable:$true] %s275
          %281 = dma.hbm_to_vmem [thread:$0]  %s3, 16384, %s276, [#allocation5], 256, 256, 16
        $region24: #{text_decoder.1} parent=11 // pred_fallthru
          _
        // Predicated region
        $region25: #{text_decoder.1} parent=11 // pred_check
          %p282 = pneg %p128
        $region26: #{text_decoder.1} parent=11 // pred_check_branch
          %284 = sbr.rel (%p282) target = $region28
        $region27: #{text_decoder.1} parent=11 // pred_region
          _
        $region28: #{text_decoder.1} parent=11 // pred_fallthru
          _
        // Predicated region
        $region29: #{text_decoder.1} parent=11 // pred_check
          %p285 = pneg %p149
        $region30: #{text_decoder.1} parent=11 // pred_check_branch
          %287 = sbr.rel (%p285) target = $region32
        $region31: #{text_decoder.1} parent=11 // pred_region
          %s289 = ssub.s32 16384, 16384
          %290 = vsyncadd [#allocation5], %s289
          %s291 = sshll.u32 [#allocation6], 4
          %s292 = int_to_ptr.vmem [resolvable:$true] %s291
          %297 = dma.hbm_to_vmem [thread:$0]  %s5, 16384, %s292, [#allocation5], 256, 256, 16
        $region32: #{text_decoder.1} parent=11 // pred_fallthru
          _
        // Predicated region
        $region33: #{text_decoder.1} parent=11 // pred_check
          %p298 = pneg %p170
        $region34: #{text_decoder.1} parent=11 // pred_check_branch
          %300 = sbr.rel (%p298) target = $region36
        $region35: #{text_decoder.1} parent=11 // pred_region
          _
        $region36: #{text_decoder.1} parent=11 // pred_fallthru
          _
        // Predicated region
        $region37: #{text_decoder.1} parent=11 // pred_check
          %p301 = pneg %p191
        $region38: #{text_decoder.1} parent=11 // pred_check_branch
          %303 = sbr.rel (%p301) target = $region40
        $region39: #{text_decoder.1} parent=11 // pred_region
          %s305 = ssub.s32 4096, 4096
          %306 = vsyncadd [#allocation8], %s305
          %s307 = sshll.u32 [#allocation7], 4
          %s308 = int_to_ptr.vmem [resolvable:$true] %s307
          %313 = dma.hbm_to_vmem [thread:$0]  %s7, 4096, %s308, [#allocation8], 64, 64, 4
        $region40: #{text_decoder.1} parent=11 // pred_fallthru
          _
        // Predicated region
        $region41: #{text_decoder.1} parent=11 // pred_check
          %p314 = pneg %p212
        $region42: #{text_decoder.1} parent=11 // pred_check_branch
          %316 = sbr.rel (%p314) target = $region44
        $region43: #{text_decoder.1} parent=11 // pred_region
          _
        $region44: #{text_decoder.1} parent=11 // pred_fallthru
          _
      $region12: #{text_decoder.1} parent=5 // pred_fallthru
        _
      %p317 = scmp.lt.s32.totalorder %s18, 3
      // Predicated region
      $region45: #{text_decoder.1} parent=5 // pred_check
        %p318 = pneg %p317
      $region46: #{text_decoder.1} parent=5 // pred_check_branch
        %320 = sbr.rel (%p318) target = $region48
      $region47: #{text_decoder.1} parent=5 // pred_region
        // Predicated region
        $region49: #{text_decoder.1} parent=47 // pred_check
          %p321 = pneg %p38
        $region50: #{text_decoder.1} parent=47 // pred_check_branch
          %323 = sbr.rel (%p321) target = $region52
        $region51: #{text_decoder.1} parent=47 // pred_region
          %p324 = scmp.lt.s32.totalorder %s18, 2
          %s325 = scalar_select %p324, %s18, 2
          %s326 = smul.addr %s325, 4
          %s327 = scalar_lea.vmem %s0, %s326
        $region52: #{text_decoder.1} parent=47 // pred_fallthru
          _
      $region48: #{text_decoder.1} parent=5 // pred_fallthru
        _
      %p328 = scmp.le.s32.totalorder 1, %s18
      %p329 = scmp.lt.s32.totalorder %s18, 4
      %p330 = pnand %p328, %p329
      %p331 = pneg %p330
      // Predicated region
      $region53: #{text_decoder.1} parent=5 // pred_check
        _
      $region54: #{text_decoder.1} parent=5 // pred_check_branch
        %333 = sbr.rel (%p330) target = $region56
      $region55: #{text_decoder.1} parent=5 // pred_region
        %s334 = ssub.s32 %s18, 1
        // Predicated region
        $region57: #{text_decoder.1} parent=55 // pred_check
          %p335 = pneg %p65
        $region58: #{text_decoder.1} parent=55 // pred_check_branch
          %337 = sbr.rel (%p335) target = $region60
        $region59: #{text_decoder.1} parent=55 // pred_region
          %338 = dma.done [#allocation3], 1024
        $region60: #{text_decoder.1} parent=55 // pred_fallthru
          _
        // Predicated region
        $region61: #{text_decoder.1} parent=55 // pred_check
          %p339 = pneg %p107
        $region62: #{text_decoder.1} parent=55 // pred_check_branch
          %341 = sbr.rel (%p339) target = $region64
        $region63: #{text_decoder.1} parent=55 // pred_region
          %342 = dma.done [#allocation5], 16384
        $region64: #{text_decoder.1} parent=55 // pred_fallthru
          _
        // Predicated region
        $region65: #{text_decoder.1} parent=55 // pred_check
          %p343 = pneg %p149
        $region66: #{text_decoder.1} parent=55 // pred_check_branch
          %345 = sbr.rel (%p343) target = $region68
        $region67: #{text_decoder.1} parent=55 // pred_region
          %346 = dma.done [#allocation5], 16384
        $region68: #{text_decoder.1} parent=55 // pred_fallthru
          _
        // Predicated region
        $region69: #{text_decoder.1} parent=55 // pred_check
          %p347 = pneg %p191
        $region70: #{text_decoder.1} parent=55 // pred_check_branch
          %349 = sbr.rel (%p347) target = $region72
        $region71: #{text_decoder.1} parent=55 // pred_region
          %350 = dma.done [#allocation8], 4096
        $region72: #{text_decoder.1} parent=55 // pred_fallthru
          _
        %p351 = scmp.lt.s32.totalorder %s23, 2
        %s352 = scalar_select %p351, %s23, 2
        %s353 = smul.addr %s352, 4
        %s354 = scalar_lea.vmem %s0, %s353
        %p355 = pneg %p44
        %p356 = pneg %p41
        %p357 = pneg %p65
        %p358 = pneg %p62
        %p359 = pneg %p86
        %p360 = pneg %p83
        %p361 = pneg %p107
        %p362 = pneg %p104
        %p363 = pneg %p128
        %p364 = pneg %p125
        %p365 = pneg %p149
        %p366 = pneg %p146
        %p367 = pneg %p170
        %p368 = pneg %p167
        %p369 = pneg %p191
        %p370 = pneg %p188
        %p371 = pneg %p212
        %p372 = pneg %p209
        %p373 = pneg %p238
        %p374 = pneg %p235
        %p375 = scmp.lt.s32.totalorder %s23, 2
        %s376 = scalar_select %p375, %s23, 2
        %s377 = smul.addr %s376, 8
        %s378 = scalar_lea.vmem %s9, %s377
        %p379 = scmp.lt.s32.totalorder %s23, 2
        %s380 = scalar_select %p379, %s23, 2
        %s381 = smul.addr %s380, 4
        %s382 = scalar_lea.vmem %s0, %s381
        %p383 = scmp.lt.s32.totalorder %s23, 2
        %s384 = scalar_select %p383, %s23, 2
        %s385 = smul.addr %s384, 8
        %s386 = scalar_lea.vmem %s9, %s385
        %v388 = vld [vmem:[%s382] sm:$0xf]
        %v389 = vld [vmem:[#allocation2] sm:$0xff]
        %v390 = vld [vmem:[#allocation2 + $0x8] sm:$0xff]
        %v391 = vld [vmem:[#allocation2 + $0x10] sm:$0xff]
        %v392 = vld [vmem:[#allocation2 + $0x18] sm:$0xff]
        %v393 = vld [vmem:[#allocation2 + $0x20] sm:$0xff]
        %v394 = vld [vmem:[#allocation2 + $0x28] sm:$0xff]
        %v395 = vld [vmem:[#allocation2 + $0x30] sm:$0xff]
        %v396 = vld [vmem:[#allocation2 + $0x38] sm:$0xff]
        %v397 = vld [vmem:[%s2] sm:$0xf]
        %v399 = vlaneseq
        %v400 = vshrl.u32 %v399, 7
        %v401 = vsub.s32 0, %v400
        %v402 = vrot.slane %v397, %v401
        %v403 = vlaneseq
        %v404 = vshrl.u32 %v403, 7
        %v405 = vsub.s32 1, %v404
        %v406 = vrot.slane %v397, %v405
        %v407 = vlaneseq
        %v408 = vshrl.u32 %v407, 7
        %v409 = vsub.s32 2, %v408
        %v410 = vrot.slane %v397, %v409
        %v411 = vlaneseq
        %v412 = vshrl.u32 %v411, 7
        %v413 = vsub.s32 3, %v412
        %v414 = vrot.slane %v397, %v413
        %v427 = vunpack.c.l.b16 %v389
        %v428 = vunpack.c.h.b16 %v389
        %v429 = vunpack.c.l.b16 %v390
        %v430 = vunpack.c.h.b16 %v390
        %v431 = vunpack.c.l.b16 %v391
        %v432 = vunpack.c.h.b16 %v391
        %v433 = vunpack.c.l.b16 %v392
        %v434 = vunpack.c.h.b16 %v392
        %v435 = vunpack.c.l.b16 %v393
        %v436 = vunpack.c.h.b16 %v393
        %v437 = vunpack.c.l.b16 %v394
        %v438 = vunpack.c.h.b16 %v394
        %v439 = vunpack.c.l.b16 %v395
        %v440 = vunpack.c.h.b16 %v395
        %v441 = vunpack.c.l.b16 %v396
        %v442 = vunpack.c.h.b16 %v396
        %v443 = vpack.c.b16 %v431, %v427
        %v444 = vpack.c.b16 %v432, %v428
        %v445 = vpack.c.b16 %v433, %v429
        %v446 = vpack.c.b16 %v434, %v430
        %v447 = vpack.c.b16 %v439, %v435
        %v448 = vpack.c.b16 %v440, %v436
        %v449 = vpack.c.b16 %v441, %v437
        %v450 = vpack.c.b16 %v442, %v438
        %vm459 = vcmask 261120
        %v461 = vsel %vm459, %v388, 0
        %463 = vmatprep.subr.bf16.mxu0 0
        %464 = vmatpush1.bf16.msra.mxu0 0
        %465 = vmatprep.subr.bf16.mxu0 0
        %466 = vmatpush1.bf16.msra.mxu0 0
        %467 = vmatprep.subr.bf16.mxu0 0
        %468 = vmatpush1.bf16.msra.mxu0 0
        %469 = vmatprep.subr.bf16.mxu0 0
        %470 = vmatpush1.bf16.msra.mxu0 0
        %471 = vmatprep.subr.bf16.mxu0 0
        %472 = vmatpush1.bf16.msra.mxu0 0
        %473 = vmatprep.subr.bf16.mxu0 0
        %474 = vmatpush1.bf16.msra.mxu0 0
        %475 = vmatprep.subr.bf16.mxu0 %v448
        %476 = vmatpush1.bf16.msra.mxu0 %v447
        %477 = vmatprep.subr.bf16.mxu0 %v444
        %478 = vmatpush1.bf16.msra.mxu0 %v443
        %479 = vmatprep.subr.bf16.mxu0 0
        %480 = vmatpush2.bf16.msra.mxu0 0
        %481 = vmatprep.subr.bf16.mxu0 0
        %482 = vmatpush2.bf16.msra.mxu0 0
        %483 = vmatprep.subr.bf16.mxu0 0
        %484 = vmatpush2.bf16.msra.mxu0 0
        %485 = vmatprep.subr.bf16.mxu0 0
        %486 = vmatpush2.bf16.msra.mxu0 0
        %487 = vmatprep.subr.bf16.mxu0 0
        %488 = vmatpush2.bf16.msra.mxu0 0
        %489 = vmatprep.subr.bf16.mxu0 0
        %490 = vmatpush2.bf16.msra.mxu0 0
        %491 = vmatprep.subr.bf16.mxu0 0
        %492 = vmatpush2.bf16.msra.mxu0 0
        %493 = vmatprep.subr.bf16.mxu0 0
        %494 = vmatpush2.bf16.msra.mxu0 0
        %495 = vmatprep.mubr.bf16.mxu0 0
        %496 = vmatmul.mubr.bf16.gmra.mxu0 %v461
        %v497 = vpop.f32.mrf.mxu0
        %v498 = vadd.f32 %v402, %v497
        %v499 = vpop.f32.mrf.mxu0
        %v500 = vadd.f32 %v406, %v499
        %v501 = vpop.f32.mrf.mxu0
        %v502 = vpop.f32.mrf.mxu0
        %503 = vdwg.mxu0
        %504 = vmatprep.subr.bf16.mxu0 0
        %505 = vmatpush1.bf16.msra.mxu0 0
        %506 = vmatprep.subr.bf16.mxu0 0
        %507 = vmatpush1.bf16.msra.mxu0 0
        %508 = vmatprep.subr.bf16.mxu0 0
        %509 = vmatpush1.bf16.msra.mxu0 0
        %510 = vmatprep.subr.bf16.mxu0 0
        %511 = vmatpush1.bf16.msra.mxu0 0
        %512 = vmatprep.subr.bf16.mxu0 0
        %513 = vmatpush1.bf16.msra.mxu0 0
        %514 = vmatprep.subr.bf16.mxu0 0
        %515 = vmatpush1.bf16.msra.mxu0 0
        %516 = vmatprep.subr.bf16.mxu0 %v450
        %517 = vmatpush1.bf16.msra.mxu0 %v449
        %518 = vmatprep.subr.bf16.mxu0 %v446
        %519 = vmatpush1.bf16.msra.mxu0 %v445
        %520 = vmatprep.subr.bf16.mxu0 0
        %521 = vmatpush2.bf16.msra.mxu0 0
        %522 = vmatprep.subr.bf16.mxu0 0
        %523 = vmatpush2.bf16.msra.mxu0 0
        %524 = vmatprep.subr.bf16.mxu0 0
        %525 = vmatpush2.bf16.msra.mxu0 0
        %526 = vmatprep.subr.bf16.mxu0 0
        %527 = vmatpush2.bf16.msra.mxu0 0
        %528 = vmatprep.subr.bf16.mxu0 0
        %529 = vmatpush2.bf16.msra.mxu0 0
        %530 = vmatprep.subr.bf16.mxu0 0
        %531 = vmatpush2.bf16.msra.mxu0 0
        %532 = vmatprep.subr.bf16.mxu0 0
        %533 = vmatpush2.bf16.msra.mxu0 0
        %534 = vmatprep.subr.bf16.mxu0 0
        %535 = vmatpush2.bf16.msra.mxu0 0
        %536 = vmatprep.mubr.bf16.mxu0 0
        %537 = vmatmul.mubr.bf16.gmra.mxu0 %v461
        %v538 = vpop.f32.mrf.mxu0
        %v539 = vadd.f32 %v410, %v538
        %v540 = vpop.f32.mrf.mxu0
        %v541 = vadd.f32 %v414, %v540
        %v542 = vpop.f32.mrf.mxu0
        %v543 = vpop.f32.mrf.mxu0
        %544 = vdwg.mxu0
        %v545 = vsub.f32 0.0, %v498
        %v546 = vsub.f32 0.0, %v500
        %v547 = vsub.f32 0.0, %v539
        %v548 = vsub.f32 0.0, %v541
        %v549 = vmul.f32 %v545, 1.442695
        %v550 = vpow.pop %v549
        %v551 = vmul.f32 %v546, 1.442695
        %v552 = vpow.pop %v551
        %v553 = vmul.f32 %v547, 1.442695
        %v554 = vpow.pop %v553
        %v555 = vmul.f32 %v548, 1.442695
        %v556 = vpow.pop %v555
        %v557 = vadd.f32 %v550, 1.0
        %v558 = vadd.f32 %v552, 1.0
        %v559 = vadd.f32 %v554, 1.0
        %v560 = vadd.f32 %v556, 1.0
        %v561 = vrcp.pop %v557
        %v562 = vrcp.pop %v558
        %v563 = vrcp.pop %v559
        %v564 = vrcp.pop %v560
        %v565 = vmul.f32 %v498, %v561
        %v566 = vmul.f32 %v500, %v562
        %v567 = vmul.f32 %v539, %v563
        %v568 = vmul.f32 %v541, %v564
        %v569 = vpack.c.bf16 %v565, %v565
        %v570 = vpack.c.bf16 %v566, %v566
        %v571 = vpack.c.bf16 %v567, %v567
        %v572 = vpack.c.bf16 %v568, %v568
        %v573 = vld [vmem:[#allocation4] sm:$0xff]
        %v574 = vld [vmem:[#allocation4 + $0x8] sm:$0xff]
        %v575 = vld [vmem:[#allocation4 + $0x10] sm:$0xff]
        %v576 = vld [vmem:[#allocation4 + $0x18] sm:$0xff]
        %v577 = vld [vmem:[#allocation4 + $0x20] sm:$0xff]
        %v578 = vld [vmem:[#allocation4 + $0x28] sm:$0xff]
        %v579 = vld [vmem:[#allocation4 + $0x30] sm:$0xff]
        %v580 = vld [vmem:[#allocation4 + $0x38] sm:$0xff]
        %v581 = vld [vmem:[#allocation4 + $0x40] sm:$0xff]
        %v582 = vld [vmem:[#allocation4 + $0x48] sm:$0xff]
        %v583 = vld [vmem:[#allocation4 + $0x50] sm:$0xff]
        %v584 = vld [vmem:[#allocation4 + $0x58] sm:$0xff]
        %v585 = vld [vmem:[#allocation4 + $0x60] sm:$0xff]
        %v586 = vld [vmem:[#allocation4 + $0x68] sm:$0xff]
        %v587 = vld [vmem:[#allocation4 + $0x70] sm:$0xff]
        %v588 = vld [vmem:[#allocation4 + $0x78] sm:$0xff]
        %v589 = vld [vmem:[#allocation4 + $0x80] sm:$0xff]
        %v590 = vld [vmem:[#allocation4 + $0x88] sm:$0xff]
        %v591 = vld [vmem:[#allocation4 + $0x90] sm:$0xff]
        %v592 = vld [vmem:[#allocation4 + $0x98] sm:$0xff]
        %v593 = vld [vmem:[#allocation4 + $0xa0] sm:$0xff]
        %v594 = vld [vmem:[#allocation4 + $0xa8] sm:$0xff]
        %v595 = vld [vmem:[#allocation4 + $0xb0] sm:$0xff]
        %v596 = vld [vmem:[#allocation4 + $0xb8] sm:$0xff]
        %v597 = vld [vmem:[#allocation4 + $0xc0] sm:$0xff]
        %v598 = vld [vmem:[#allocation4 + $0xc8] sm:$0xff]
        %v599 = vld [vmem:[#allocation4 + $0xd0] sm:$0xff]
        %v600 = vld [vmem:[#allocation4 + $0xd8] sm:$0xff]
        %v601 = vld [vmem:[#allocation4 + $0xe0] sm:$0xff]
        %v602 = vld [vmem:[#allocation4 + $0xe8] sm:$0xff]
        %v603 = vld [vmem:[#allocation4 + $0xf0] sm:$0xff]
        %v604 = vld [vmem:[#allocation4 + $0xf8] sm:$0xff]
        %v605 = vld [vmem:[#allocation4 + $0x100] sm:$0xff]
        %v606 = vld [vmem:[#allocation4 + $0x108] sm:$0xff]
        %v607 = vld [vmem:[#allocation4 + $0x110] sm:$0xff]
        %v608 = vld [vmem:[#allocation4 + $0x118] sm:$0xff]
        %v609 = vld [vmem:[#allocation4 + $0x120] sm:$0xff]
        %v610 = vld [vmem:[#allocation4 + $0x128] sm:$0xff]
        %v611 = vld [vmem:[#allocation4 + $0x130] sm:$0xff]
        %v612 = vld [vmem:[#allocation4 + $0x138] sm:$0xff]
        %v613 = vld [vmem:[#allocation4 + $0x140] sm:$0xff]
        %v614 = vld [vmem:[#allocation4 + $0x148] sm:$0xff]
        %v615 = vld [vmem:[#allocation4 + $0x150] sm:$0xff]
        %v616 = vld [vmem:[#allocation4 + $0x158] sm:$0xff]
        %v617 = vld [vmem:[#allocation4 + $0x160] sm:$0xff]
        %v618 = vld [vmem:[#allocation4 + $0x168] sm:$0xff]
        %v619 = vld [vmem:[#allocation4 + $0x170] sm:$0xff]
        %v620 = vld [vmem:[#allocation4 + $0x178] sm:$0xff]
        %v621 = vld [vmem:[#allocation4 + $0x180] sm:$0xff]
        %v622 = vld [vmem:[#allocation4 + $0x188] sm:$0xff]
        %v623 = vld [vmem:[#allocation4 + $0x190] sm:$0xff]
        %v624 = vld [vmem:[#allocation4 + $0x198] sm:$0xff]
        %v625 = vld [vmem:[#allocation4 + $0x1a0] sm:$0xff]
        %v626 = vld [vmem:[#allocation4 + $0x1a8] sm:$0xff]
        %v627 = vld [vmem:[#allocation4 + $0x1b0] sm:$0xff]
        %v628 = vld [vmem:[#allocation4 + $0x1b8] sm:$0xff]
        %v629 = vld [vmem:[#allocation4 + $0x1c0] sm:$0xff]
        %v630 = vld [vmem:[#allocation4 + $0x1c8] sm:$0xff]
        %v631 = vld [vmem:[#allocation4 + $0x1d0] sm:$0xff]
        %v632 = vld [vmem:[#allocation4 + $0x1d8] sm:$0xff]
        %v633 = vld [vmem:[#allocation4 + $0x1e0] sm:$0xff]
        %v634 = vld [vmem:[#allocation4 + $0x1e8] sm:$0xff]
        %v635 = vld [vmem:[#allocation4 + $0x1f0] sm:$0xff]
        %v636 = vld [vmem:[#allocation4 + $0x1f8] sm:$0xff]
        %v637 = vld [vmem:[#allocation4 + $0x200] sm:$0xff]
        %v638 = vld [vmem:[#allocation4 + $0x208] sm:$0xff]
        %v639 = vld [vmem:[#allocation4 + $0x210] sm:$0xff]
        %v640 = vld [vmem:[#allocation4 + $0x218] sm:$0xff]
        %v641 = vld [vmem:[#allocation4 + $0x220] sm:$0xff]
        %v642 = vld [vmem:[#allocation4 + $0x228] sm:$0xff]
        %v643 = vld [vmem:[#allocation4 + $0x230] sm:$0xff]
        %v644 = vld [vmem:[#allocation4 + $0x238] sm:$0xff]
        %v645 = vld [vmem:[#allocation4 + $0x240] sm:$0xff]
        %v646 = vld [vmem:[#allocation4 + $0x248] sm:$0xff]
        %v647 = vld [vmem:[#allocation4 + $0x250] sm:$0xff]
        %v648 = vld [vmem:[#allocation4 + $0x258] sm:$0xff]
        %v649 = vld [vmem:[#allocation4 + $0x260] sm:$0xff]
        %v650 = vld [vmem:[#allocation4 + $0x268] sm:$0xff]
        %v651 = vld [vmem:[#allocation4 + $0x270] sm:$0xff]
        %v652 = vld [vmem:[#allocation4 + $0x278] sm:$0xff]
        %v653 = vld [vmem:[#allocation4 + $0x280] sm:$0xff]
        %v654 = vld [vmem:[#allocation4 + $0x288] sm:$0xff]
        %v655 = vld [vmem:[#allocation4 + $0x290] sm:$0xff]
        %v656 = vld [vmem:[#allocation4 + $0x298] sm:$0xff]
        %v657 = vld [vmem:[#allocation4 + $0x2a0] sm:$0xff]
        %v658 = vld [vmem:[#allocation4 + $0x2a8] sm:$0xff]
        %v659 = vld [vmem:[#allocation4 + $0x2b0] sm:$0xff]
        %v660 = vld [vmem:[#allocation4 + $0x2b8] sm:$0xff]
        %v661 = vld [vmem:[#allocation4 + $0x2c0] sm:$0xff]
        %v662 = vld [vmem:[#allocation4 + $0x2c8] sm:$0xff]
        %v663 = vld [vmem:[#allocation4 + $0x2d0] sm:$0xff]
        %v664 = vld [vmem:[#allocation4 + $0x2d8] sm:$0xff]
        %v665 = vld [vmem:[#allocation4 + $0x2e0] sm:$0xff]
        %v666 = vld [vmem:[#allocation4 + $0x2e8] sm:$0xff]
        %v667 = vld [vmem:[#allocation4 + $0x2f0] sm:$0xff]
        %v668 = vld [vmem:[#allocation4 + $0x2f8] sm:$0xff]
        %v669 = vld [vmem:[#allocation4 + $0x300] sm:$0xff]
        %v670 = vld [vmem:[#allocation4 + $0x308] sm:$0xff]
        %v671 = vld [vmem:[#allocation4 + $0x310] sm:$0xff]
        %v672 = vld [vmem:[#allocation4 + $0x318] sm:$0xff]
        %v673 = vld [vmem:[#allocation4 + $0x320] sm:$0xff]
        %v674 = vld [vmem:[#allocation4 + $0x328] sm:$0xff]
        %v675 = vld [vmem:[#allocation4 + $0x330] sm:$0xff]
        %v676 = vld [vmem:[#allocation4 + $0x338] sm:$0xff]
        %v677 = vld [vmem:[#allocation4 + $0x340] sm:$0xff]
        %v678 = vld [vmem:[#allocation4 + $0x348] sm:$0xff]
        %v679 = vld [vmem:[#allocation4 + $0x350] sm:$0xff]
        %v680 = vld [vmem:[#allocation4 + $0x358] sm:$0xff]
        %v681 = vld [vmem:[#allocation4 + $0x360] sm:$0xff]
        %v682 = vld [vmem:[#allocation4 + $0x368] sm:$0xff]
        %v683 = vld [vmem:[#allocation4 + $0x370] sm:$0xff]
        %v684 = vld [vmem:[#allocation4 + $0x378] sm:$0xff]
        %v685 = vld [vmem:[#allocation4 + $0x380] sm:$0xff]
        %v686 = vld [vmem:[#allocation4 + $0x388] sm:$0xff]
        %v687 = vld [vmem:[#allocation4 + $0x390] sm:$0xff]
        %v688 = vld [vmem:[#allocation4 + $0x398] sm:$0xff]
        %v689 = vld [vmem:[#allocation4 + $0x3a0] sm:$0xff]
        %v690 = vld [vmem:[#allocation4 + $0x3a8] sm:$0xff]
        %v691 = vld [vmem:[#allocation4 + $0x3b0] sm:$0xff]
        %v692 = vld [vmem:[#allocation4 + $0x3b8] sm:$0xff]
        %v693 = vld [vmem:[#allocation4 + $0x3c0] sm:$0xff]
        %v694 = vld [vmem:[#allocation4 + $0x3c8] sm:$0xff]
        %v695 = vld [vmem:[#allocation4 + $0x3d0] sm:$0xff]
        %v696 = vld [vmem:[#allocation4 + $0x3d8] sm:$0xff]
        %v697 = vld [vmem:[#allocation4 + $0x3e0] sm:$0xff]
        %v698 = vld [vmem:[#allocation4 + $0x3e8] sm:$0xff]
        %v699 = vld [vmem:[#allocation4 + $0x3f0] sm:$0xff]
        %v700 = vld [vmem:[#allocation4 + $0x3f8] sm:$0xff]
        %v701 = vld [vmem:[%s4] sm:$0xf]
        %v703 = vlaneseq
        %v704 = vshrl.u32 %v703, 7
        %v705 = vsub.s32 0, %v704
        %v706 = vrot.slane %v701, %v705
        %v707 = vlaneseq
        %v708 = vshrl.u32 %v707, 7
        %v709 = vsub.s32 1, %v708
        %v710 = vrot.slane %v701, %v709
        %v711 = vlaneseq
        %v712 = vshrl.u32 %v711, 7
        %v713 = vsub.s32 2, %v712
        %v714 = vrot.slane %v701, %v713
        %v715 = vlaneseq
        %v716 = vshrl.u32 %v715, 7
        %v717 = vsub.s32 3, %v716
        %v718 = vrot.slane %v701, %v717
        %v851 = vunpack.c.l.b16 %v573
        %v852 = vunpack.c.h.b16 %v573
        %v853 = vunpack.c.l.b16 %v574
        %v854 = vunpack.c.h.b16 %v574
        %v855 = vunpack.c.l.b16 %v575
        %v856 = vunpack.c.h.b16 %v575
        %v857 = vunpack.c.l.b16 %v576
        %v858 = vunpack.c.h.b16 %v576
        %v859 = vunpack.c.l.b16 %v577
        %v860 = vunpack.c.h.b16 %v577
        %v861 = vunpack.c.l.b16 %v578
        %v862 = vunpack.c.h.b16 %v578
        %v863 = vunpack.c.l.b16 %v579
        %v864 = vunpack.c.h.b16 %v579
        %v865 = vunpack.c.l.b16 %v580
        %v866 = vunpack.c.h.b16 %v580
        %v867 = vunpack.c.l.b16 %v581
        %v868 = vunpack.c.h.b16 %v581
        %v869 = vunpack.c.l.b16 %v582
        %v870 = vunpack.c.h.b16 %v582
        %v871 = vunpack.c.l.b16 %v583
        %v872 = vunpack.c.h.b16 %v583
        %v873 = vunpack.c.l.b16 %v584
        %v874 = vunpack.c.h.b16 %v584
        %v875 = vunpack.c.l.b16 %v585
        %v876 = vunpack.c.h.b16 %v585
        %v877 = vunpack.c.l.b16 %v586
        %v878 = vunpack.c.h.b16 %v586
        %v879 = vunpack.c.l.b16 %v587
        %v880 = vunpack.c.h.b16 %v587
        %v881 = vunpack.c.l.b16 %v588
        %v882 = vunpack.c.h.b16 %v588
        %v883 = vunpack.c.l.b16 %v589
        %v884 = vunpack.c.h.b16 %v589
        %v885 = vunpack.c.l.b16 %v590
        %v886 = vunpack.c.h.b16 %v590
        %v887 = vunpack.c.l.b16 %v591
        %v888 = vunpack.c.h.b16 %v591
        %v889 = vunpack.c.l.b16 %v592
        %v890 = vunpack.c.h.b16 %v592
        %v891 = vunpack.c.l.b16 %v593
        %v892 = vunpack.c.h.b16 %v593
        %v893 = vunpack.c.l.b16 %v594
        %v894 = vunpack.c.h.b16 %v594
        %v895 = vunpack.c.l.b16 %v595
        %v896 = vunpack.c.h.b16 %v595
        %v897 = vunpack.c.l.b16 %v596
        %v898 = vunpack.c.h.b16 %v596
        %v899 = vunpack.c.l.b16 %v597
        %v900 = vunpack.c.h.b16 %v597
        %v901 = vunpack.c.l.b16 %v598
        %v902 = vunpack.c.h.b16 %v598
        %v903 = vunpack.c.l.b16 %v599
        %v904 = vunpack.c.h.b16 %v599
        %v905 = vunpack.c.l.b16 %v600
        %v906 = vunpack.c.h.b16 %v600
        %v907 = vunpack.c.l.b16 %v601
        %v908 = vunpack.c.h.b16 %v601
        %v909 = vunpack.c.l.b16 %v602
        %v910 = vunpack.c.h.b16 %v602
        %v911 = vunpack.c.l.b16 %v603
        %v912 = vunpack.c.h.b16 %v603
        %v913 = vunpack.c.l.b16 %v604
        %v914 = vunpack.c.h.b16 %v604
        %v915 = vunpack.c.l.b16 %v605
        %v916 = vunpack.c.h.b16 %v605
        %v917 = vunpack.c.l.b16 %v606
        %v918 = vunpack.c.h.b16 %v606
        %v919 = vunpack.c.l.b16 %v607
        %v920 = vunpack.c.h.b16 %v607
        %v921 = vunpack.c.l.b16 %v608
        %v922 = vunpack.c.h.b16 %v608
        %v923 = vunpack.c.l.b16 %v609
        %v924 = vunpack.c.h.b16 %v609
        %v925 = vunpack.c.l.b16 %v610
        %v926 = vunpack.c.h.b16 %v610
        %v927 = vunpack.c.l.b16 %v611
        %v928 = vunpack.c.h.b16 %v611
        %v929 = vunpack.c.l.b16 %v612
        %v930 = vunpack.c.h.b16 %v612
        %v931 = vunpack.c.l.b16 %v613
        %v932 = vunpack.c.h.b16 %v613
        %v933 = vunpack.c.l.b16 %v614
        %v934 = vunpack.c.h.b16 %v614
        %v935 = vunpack.c.l.b16 %v615
        %v936 = vunpack.c.h.b16 %v615
        %v937 = vunpack.c.l.b16 %v616
        %v938 = vunpack.c.h.b16 %v616
        %v939 = vunpack.c.l.b16 %v617
        %v940 = vunpack.c.h.b16 %v617
        %v941 = vunpack.c.l.b16 %v618
        %v942 = vunpack.c.h.b16 %v618
        %v943 = vunpack.c.l.b16 %v619
        %v944 = vunpack.c.h.b16 %v619
        %v945 = vunpack.c.l.b16 %v620
        %v946 = vunpack.c.h.b16 %v620
        %v947 = vunpack.c.l.b16 %v621
        %v948 = vunpack.c.h.b16 %v621
        %v949 = vunpack.c.l.b16 %v622
        %v950 = vunpack.c.h.b16 %v622
        %v951 = vunpack.c.l.b16 %v623
        %v952 = vunpack.c.h.b16 %v623
        %v953 = vunpack.c.l.b16 %v624
        %v954 = vunpack.c.h.b16 %v624
        %v955 = vunpack.c.l.b16 %v625
        %v956 = vunpack.c.h.b16 %v625
        %v957 = vunpack.c.l.b16 %v626
        %v958 = vunpack.c.h.b16 %v626
        %v959 = vunpack.c.l.b16 %v627
        %v960 = vunpack.c.h.b16 %v627
        %v961 = vunpack.c.l.b16 %v628
        %v962 = vunpack.c.h.b16 %v628
        %v963 = vunpack.c.l.b16 %v629
        %v964 = vunpack.c.h.b16 %v629
        %v965 = vunpack.c.l.b16 %v630
        %v966 = vunpack.c.h.b16 %v630
        %v967 = vunpack.c.l.b16 %v631
        %v968 = vunpack.c.h.b16 %v631
        %v969 = vunpack.c.l.b16 %v632
        %v970 = vunpack.c.h.b16 %v632
        %v971 = vunpack.c.l.b16 %v633
        %v972 = vunpack.c.h.b16 %v633
        %v973 = vunpack.c.l.b16 %v634
        %v974 = vunpack.c.h.b16 %v634
        %v975 = vunpack.c.l.b16 %v635
        %v976 = vunpack.c.h.b16 %v635
        %v977 = vunpack.c.l.b16 %v636
        %v978 = vunpack.c.h.b16 %v636
        %v979 = vunpack.c.l.b16 %v637
        %v980 = vunpack.c.h.b16 %v637
        %v981 = vunpack.c.l.b16 %v638
        %v982 = vunpack.c.h.b16 %v638
        %v983 = vunpack.c.l.b16 %v639
        %v984 = vunpack.c.h.b16 %v639
        %v985 = vunpack.c.l.b16 %v640
        %v986 = vunpack.c.h.b16 %v640
        %v987 = vunpack.c.l.b16 %v641
        %v988 = vunpack.c.h.b16 %v641
        %v989 = vunpack.c.l.b16 %v642
        %v990 = vunpack.c.h.b16 %v642
        %v991 = vunpack.c.l.b16 %v643
        %v992 = vunpack.c.h.b16 %v643
        %v993 = vunpack.c.l.b16 %v644
        %v994 = vunpack.c.h.b16 %v644
        %v995 = vunpack.c.l.b16 %v645
        %v996 = vunpack.c.h.b16 %v645
        %v997 = vunpack.c.l.b16 %v646
        %v998 = vunpack.c.h.b16 %v646
        %v999 = vunpack.c.l.b16 %v647
        %v1000 = vunpack.c.h.b16 %v647
        %v1001 = vunpack.c.l.b16 %v648
        %v1002 = vunpack.c.h.b16 %v648
        %v1003 = vunpack.c.l.b16 %v649
        %v1004 = vunpack.c.h.b16 %v649
        %v1005 = vunpack.c.l.b16 %v650
        %v1006 = vunpack.c.h.b16 %v650
        %v1007 = vunpack.c.l.b16 %v651
        %v1008 = vunpack.c.h.b16 %v651
        %v1009 = vunpack.c.l.b16 %v652
        %v1010 = vunpack.c.h.b16 %v652
        %v1011 = vunpack.c.l.b16 %v653
        %v1012 = vunpack.c.h.b16 %v653
        %v1013 = vunpack.c.l.b16 %v654
        %v1014 = vunpack.c.h.b16 %v654
        %v1015 = vunpack.c.l.b16 %v655
        %v1016 = vunpack.c.h.b16 %v655
        %v1017 = vunpack.c.l.b16 %v656
        %v1018 = vunpack.c.h.b16 %v656
        %v1019 = vunpack.c.l.b16 %v657
        %v1020 = vunpack.c.h.b16 %v657
        %v1021 = vunpack.c.l.b16 %v658
        %v1022 = vunpack.c.h.b16 %v658
        %v1023 = vunpack.c.l.b16 %v659
        %v1024 = vunpack.c.h.b16 %v659
        %v1025 = vunpack.c.l.b16 %v660
        %v1026 = vunpack.c.h.b16 %v660
        %v1027 = vunpack.c.l.b16 %v661
        %v1028 = vunpack.c.h.b16 %v661
        %v1029 = vunpack.c.l.b16 %v662
        %v1030 = vunpack.c.h.b16 %v662
        %v1031 = vunpack.c.l.b16 %v663
        %v1032 = vunpack.c.h.b16 %v663
        %v1033 = vunpack.c.l.b16 %v664
        %v1034 = vunpack.c.h.b16 %v664
        %v1035 = vunpack.c.l.b16 %v665
        %v1036 = vunpack.c.h.b16 %v665
        %v1037 = vunpack.c.l.b16 %v666
        %v1038 = vunpack.c.h.b16 %v666
        %v1039 = vunpack.c.l.b16 %v667
        %v1040 = vunpack.c.h.b16 %v667
        %v1041 = vunpack.c.l.b16 %v668
        %v1042 = vunpack.c.h.b16 %v668
        %v1043 = vunpack.c.l.b16 %v669
        %v1044 = vunpack.c.h.b16 %v669
        %v1045 = vunpack.c.l.b16 %v670
        %v1046 = vunpack.c.h.b16 %v670
        %v1047 = vunpack.c.l.b16 %v671
        %v1048 = vunpack.c.h.b16 %v671
        %v1049 = vunpack.c.l.b16 %v672
        %v1050 = vunpack.c.h.b16 %v672
        %v1051 = vunpack.c.l.b16 %v673
        %v1052 = vunpack.c.h.b16 %v673
        %v1053 = vunpack.c.l.b16 %v674
        %v1054 = vunpack.c.h.b16 %v674
        %v1055 = vunpack.c.l.b16 %v675
        %v1056 = vunpack.c.h.b16 %v675
        %v1057 = vunpack.c.l.b16 %v676
        %v1058 = vunpack.c.h.b16 %v676
        %v1059 = vunpack.c.l.b16 %v677
        %v1060 = vunpack.c.h.b16 %v677
        %v1061 = vunpack.c.l.b16 %v678
        %v1062 = vunpack.c.h.b16 %v678
        %v1063 = vunpack.c.l.b16 %v679
        %v1064 = vunpack.c.h.b16 %v679
        %v1065 = vunpack.c.l.b16 %v680
        %v1066 = vunpack.c.h.b16 %v680
        %v1067 = vunpack.c.l.b16 %v681
        %v1068 = vunpack.c.h.b16 %v681
        %v1069 = vunpack.c.l.b16 %v682
        %v1070 = vunpack.c.h.b16 %v682
        %v1071 = vunpack.c.l.b16 %v683
        %v1072 = vunpack.c.h.b16 %v683
        %v1073 = vunpack.c.l.b16 %v684
        %v1074 = vunpack.c.h.b16 %v684
        %v1075 = vunpack.c.l.b16 %v685
        %v1076 = vunpack.c.h.b16 %v685
        %v1077 = vunpack.c.l.b16 %v686
        %v1078 = vunpack.c.h.b16 %v686
        %v1079 = vunpack.c.l.b16 %v687
        %v1080 = vunpack.c.h.b16 %v687
        %v1081 = vunpack.c.l.b16 %v688
        %v1082 = vunpack.c.h.b16 %v688
        %v1083 = vunpack.c.l.b16 %v689
        %v1084 = vunpack.c.h.b16 %v689
        %v1085 = vunpack.c.l.b16 %v690
        %v1086 = vunpack.c.h.b16 %v690
        %v1087 = vunpack.c.l.b16 %v691
        %v1088 = vunpack.c.h.b16 %v691
        %v1089 = vunpack.c.l.b16 %v692
        %v1090 = vunpack.c.h.b16 %v692
        %v1091 = vunpack.c.l.b16 %v693
        %v1092 = vunpack.c.h.b16 %v693
        %v1093 = vunpack.c.l.b16 %v694
        %v1094 = vunpack.c.h.b16 %v694
        %v1095 = vunpack.c.l.b16 %v695
        %v1096 = vunpack.c.h.b16 %v695
        %v1097 = vunpack.c.l.b16 %v696
        %v1098 = vunpack.c.h.b16 %v696
        %v1099 = vunpack.c.l.b16 %v697
        %v1100 = vunpack.c.h.b16 %v697
        %v1101 = vunpack.c.l.b16 %v698
        %v1102 = vunpack.c.h.b16 %v698
        %v1103 = vunpack.c.l.b16 %v699
        %v1104 = vunpack.c.h.b16 %v699
        %v1105 = vunpack.c.l.b16 %v700
        %v1106 = vunpack.c.h.b16 %v700
        %v1107 = vpack.c.b16 %v855, %v851
        %v1108 = vpack.c.b16 %v856, %v852
        %v1109 = vpack.c.b16 %v857, %v853
        %v1110 = vpack.c.b16 %v858, %v854
        %v1111 = vpack.c.b16 %v863, %v859
        %v1112 = vpack.c.b16 %v864, %v860
        %v1113 = vpack.c.b16 %v865, %v861
        %v1114 = vpack.c.b16 %v866, %v862
        %v1115 = vpack.c.b16 %v871, %v867
        %v1116 = vpack.c.b16 %v872, %v868
        %v1117 = vpack.c.b16 %v873, %v869
        %v1118 = vpack.c.b16 %v874, %v870
        %v1119 = vpack.c.b16 %v879, %v875
        %v1120 = vpack.c.b16 %v880, %v876
        %v1121 = vpack.c.b16 %v881, %v877
        %v1122 = vpack.c.b16 %v882, %v878
        %v1123 = vpack.c.b16 %v887, %v883
        %v1124 = vpack.c.b16 %v888, %v884
        %v1125 = vpack.c.b16 %v889, %v885
        %v1126 = vpack.c.b16 %v890, %v886
        %v1127 = vpack.c.b16 %v895, %v891
        %v1128 = vpack.c.b16 %v896, %v892
        %v1129 = vpack.c.b16 %v897, %v893
        %v1130 = vpack.c.b16 %v898, %v894
        %v1131 = vpack.c.b16 %v903, %v899
        %v1132 = vpack.c.b16 %v904, %v900
        %v1133 = vpack.c.b16 %v905, %v901
        %v1134 = vpack.c.b16 %v906, %v902
        %v1135 = vpack.c.b16 %v911, %v907
        %v1136 = vpack.c.b16 %v912, %v908
        %v1137 = vpack.c.b16 %v913, %v909
        %v1138 = vpack.c.b16 %v914, %v910
        %v1139 = vpack.c.b16 %v919, %v915
        %v1140 = vpack.c.b16 %v920, %v916
        %v1141 = vpack.c.b16 %v921, %v917
        %v1142 = vpack.c.b16 %v922, %v918
        %v1143 = vpack.c.b16 %v927, %v923
        %v1144 = vpack.c.b16 %v928, %v924
        %v1145 = vpack.c.b16 %v929, %v925
        %v1146 = vpack.c.b16 %v930, %v926
        %v1147 = vpack.c.b16 %v935, %v931
        %v1148 = vpack.c.b16 %v936, %v932
        %v1149 = vpack.c.b16 %v937, %v933
        %v1150 = vpack.c.b16 %v938, %v934
        %v1151 = vpack.c.b16 %v943, %v939
        %v1152 = vpack.c.b16 %v944, %v940
        %v1153 = vpack.c.b16 %v945, %v941
        %v1154 = vpack.c.b16 %v946, %v942
        %v1155 = vpack.c.b16 %v951, %v947
        %v1156 = vpack.c.b16 %v952, %v948
        %v1157 = vpack.c.b16 %v953, %v949
        %v1158 = vpack.c.b16 %v954, %v950
        %v1159 = vpack.c.b16 %v959, %v955
        %v1160 = vpack.c.b16 %v960, %v956
        %v1161 = vpack.c.b16 %v961, %v957
        %v1162 = vpack.c.b16 %v962, %v958
        %v1163 = vpack.c.b16 %v967, %v963
        %v1164 = vpack.c.b16 %v968, %v964
        %v1165 = vpack.c.b16 %v969, %v965
        %v1166 = vpack.c.b16 %v970, %v966
        %v1167 = vpack.c.b16 %v975, %v971
        %v1168 = vpack.c.b16 %v976, %v972
        %v1169 = vpack.c.b16 %v977, %v973
        %v1170 = vpack.c.b16 %v978, %v974
        %v1171 = vpack.c.b16 %v983, %v979
        %v1172 = vpack.c.b16 %v984, %v980
        %v1173 = vpack.c.b16 %v985, %v981
        %v1174 = vpack.c.b16 %v986, %v982
        %v1175 = vpack.c.b16 %v991, %v987
        %v1176 = vpack.c.b16 %v992, %v988
        %v1177 = vpack.c.b16 %v993, %v989
        %v1178 = vpack.c.b16 %v994, %v990
        %v1179 = vpack.c.b16 %v999, %v995
        %v1180 = vpack.c.b16 %v1000, %v996
        %v1181 = vpack.c.b16 %v1001, %v997
        %v1182 = vpack.c.b16 %v1002, %v998
        %v1183 = vpack.c.b16 %v1007, %v1003
        %v1184 = vpack.c.b16 %v1008, %v1004
        %v1185 = vpack.c.b16 %v1009, %v1005
        %v1186 = vpack.c.b16 %v1010, %v1006
        %v1187 = vpack.c.b16 %v1015, %v1011
        %v1188 = vpack.c.b16 %v1016, %v1012
        %v1189 = vpack.c.b16 %v1017, %v1013
        %v1190 = vpack.c.b16 %v1018, %v1014
        %v1191 = vpack.c.b16 %v1023, %v1019
        %v1192 = vpack.c.b16 %v1024, %v1020
        %v1193 = vpack.c.b16 %v1025, %v1021
        %v1194 = vpack.c.b16 %v1026, %v1022
        %v1195 = vpack.c.b16 %v1031, %v1027
        %v1196 = vpack.c.b16 %v1032, %v1028
        %v1197 = vpack.c.b16 %v1033, %v1029
        %v1198 = vpack.c.b16 %v1034, %v1030
        %v1199 = vpack.c.b16 %v1039, %v1035
        %v1200 = vpack.c.b16 %v1040, %v1036
        %v1201 = vpack.c.b16 %v1041, %v1037
        %v1202 = vpack.c.b16 %v1042, %v1038
        %v1203 = vpack.c.b16 %v1047, %v1043
        %v1204 = vpack.c.b16 %v1048, %v1044
        %v1205 = vpack.c.b16 %v1049, %v1045
        %v1206 = vpack.c.b16 %v1050, %v1046
        %v1207 = vpack.c.b16 %v1055, %v1051
        %v1208 = vpack.c.b16 %v1056, %v1052
        %v1209 = vpack.c.b16 %v1057, %v1053
        %v1210 = vpack.c.b16 %v1058, %v1054
        %v1211 = vpack.c.b16 %v1063, %v1059
        %v1212 = vpack.c.b16 %v1064, %v1060
        %v1213 = vpack.c.b16 %v1065, %v1061
        %v1214 = vpack.c.b16 %v1066, %v1062
        %v1215 = vpack.c.b16 %v1071, %v1067
        %v1216 = vpack.c.b16 %v1072, %v1068
        %v1217 = vpack.c.b16 %v1073, %v1069
        %v1218 = vpack.c.b16 %v1074, %v1070
        %v1219 = vpack.c.b16 %v1079, %v1075
        %v1220 = vpack.c.b16 %v1080, %v1076
        %v1221 = vpack.c.b16 %v1081, %v1077
        %v1222 = vpack.c.b16 %v1082, %v1078
        %v1223 = vpack.c.b16 %v1087, %v1083
        %v1224 = vpack.c.b16 %v1088, %v1084
        %v1225 = vpack.c.b16 %v1089, %v1085
        %v1226 = vpack.c.b16 %v1090, %v1086
        %v1227 = vpack.c.b16 %v1095, %v1091
        %v1228 = vpack.c.b16 %v1096, %v1092
        %v1229 = vpack.c.b16 %v1097, %v1093
        %v1230 = vpack.c.b16 %v1098, %v1094
        %v1231 = vpack.c.b16 %v1103, %v1099
        %v1232 = vpack.c.b16 %v1104, %v1100
        %v1233 = vpack.c.b16 %v1105, %v1101
        %v1234 = vpack.c.b16 %v1106, %v1102
        %1363 = vmatprep.subr.bf16.mxu0 %v1136
        %1364 = vmatpush1.bf16.msra.mxu0 %v1135
        %1365 = vmatprep.subr.bf16.mxu0 %v1132
        %1366 = vmatpush1.bf16.msra.mxu0 %v1131
        %1367 = vmatprep.subr.bf16.mxu0 %v1128
        %1368 = vmatpush1.bf16.msra.mxu0 %v1127
        %1369 = vmatprep.subr.bf16.mxu0 %v1124
        %1370 = vmatpush1.bf16.msra.mxu0 %v1123
        %1371 = vmatprep.subr.bf16.mxu0 %v1120
        %1372 = vmatpush1.bf16.msra.mxu0 %v1119
        %1373 = vmatprep.subr.bf16.mxu0 %v1116
        %1374 = vmatpush1.bf16.msra.mxu0 %v1115
        %1375 = vmatprep.subr.bf16.mxu0 %v1112
        %1376 = vmatpush1.bf16.msra.mxu0 %v1111
        %1377 = vmatprep.subr.bf16.mxu0 %v1108
        %1378 = vmatpush1.bf16.msra.mxu0 %v1107
        %1379 = vmatprep.subr.bf16.mxu0 %v1168
        %1380 = vmatpush2.bf16.msra.mxu0 %v1167
        %1381 = vmatprep.subr.bf16.mxu0 %v1164
        %1382 = vmatpush2.bf16.msra.mxu0 %v1163
        %1383 = vmatprep.subr.bf16.mxu0 %v1160
        %1384 = vmatpush2.bf16.msra.mxu0 %v1159
        %1385 = vmatprep.subr.bf16.mxu0 %v1156
        %1386 = vmatpush2.bf16.msra.mxu0 %v1155
        %1387 = vmatprep.subr.bf16.mxu0 %v1152
        %1388 = vmatpush2.bf16.msra.mxu0 %v1151
        %1389 = vmatprep.subr.bf16.mxu0 %v1148
        %1390 = vmatpush2.bf16.msra.mxu0 %v1147
        %1391 = vmatprep.subr.bf16.mxu0 %v1144
        %1392 = vmatpush2.bf16.msra.mxu0 %v1143
        %1393 = vmatprep.subr.bf16.mxu0 %v1140
        %1394 = vmatpush2.bf16.msra.mxu0 %v1139
        %1395 = vmatprep.mubr.bf16.mxu0 %v570
        %1396 = vmatmul.mubr.bf16.gmra.mxu0 %v569
        %v1397 = vpop.f32.mrf.mxu0
        %v1398 = vadd.f32 %v706, %v1397
        %v1399 = vpop.f32.mrf.mxu0
        %v1400 = vadd.f32 %v710, %v1399
        %v1401 = vpop.f32.mrf.mxu0
        %v1402 = vpop.f32.mrf.mxu0
        %1403 = vdwg.mxu0
        %1404 = vmatprep.subr.bf16.mxu0 %v1200
        %1405 = vmatpush1.bf16.msra.mxu0 %v1199
        %1406 = vmatprep.subr.bf16.mxu0 %v1196
        %1407 = vmatpush1.bf16.msra.mxu0 %v1195
        %1408 = vmatprep.subr.bf16.mxu0 %v1192
        %1409 = vmatpush1.bf16.msra.mxu0 %v1191
        %1410 = vmatprep.subr.bf16.mxu0 %v1188
        %1411 = vmatpush1.bf16.msra.mxu0 %v1187
        %1412 = vmatprep.subr.bf16.mxu0 %v1184
        %1413 = vmatpush1.bf16.msra.mxu0 %v1183
        %1414 = vmatprep.subr.bf16.mxu0 %v1180
        %1415 = vmatpush1.bf16.msra.mxu0 %v1179
        %1416 = vmatprep.subr.bf16.mxu0 %v1176
        %1417 = vmatpush1.bf16.msra.mxu0 %v1175
        %1418 = vmatprep.subr.bf16.mxu0 %v1172
        %1419 = vmatpush1.bf16.msra.mxu0 %v1171
        %1420 = vmatprep.subr.bf16.mxu0 %v1232
        %1421 = vmatpush2.bf16.msra.mxu0 %v1231
        %1422 = vmatprep.subr.bf16.mxu0 %v1228
        %1423 = vmatpush2.bf16.msra.mxu0 %v1227
        %1424 = vmatprep.subr.bf16.mxu0 %v1224
        %1425 = vmatpush2.bf16.msra.mxu0 %v1223
        %1426 = vmatprep.subr.bf16.mxu0 %v1220
        %1427 = vmatpush2.bf16.msra.mxu0 %v1219
        %1428 = vmatprep.subr.bf16.mxu0 %v1216
        %1429 = vmatpush2.bf16.msra.mxu0 %v1215
        %1430 = vmatprep.subr.bf16.mxu0 %v1212
        %1431 = vmatpush2.bf16.msra.mxu0 %v1211
        %1432 = vmatprep.subr.bf16.mxu0 %v1208
        %1433 = vmatpush2.bf16.msra.mxu0 %v1207
        %1434 = vmatprep.subr.bf16.mxu0 %v1204
        %1435 = vmatpush2.bf16.msra.mxu0 %v1203
        %1436 = vmatprep.mubr.bf16.mxu0 %v572
        %1437 = vmatmul.mubr.bf16.gmra.mxu0 %v571
        %v1438 = vpop.f32.mrf.mxu0
        %v1439 = vadd.f32 %v1398, %v1438
        %v1440 = vpop.f32.mrf.mxu0
        %v1441 = vadd.f32 %v1400, %v1440
        %v1442 = vpop.f32.mrf.mxu0
        %v1443 = vpop.f32.mrf.mxu0
        %1444 = vdwg.mxu0
        %1445 = vmatprep.subr.bf16.mxu0 %v1138
        %1446 = vmatpush1.bf16.msra.mxu0 %v1137
        %1447 = vmatprep.subr.bf16.mxu0 %v1134
        %1448 = vmatpush1.bf16.msra.mxu0 %v1133
        %1449 = vmatprep.subr.bf16.mxu0 %v1130
        %1450 = vmatpush1.bf16.msra.mxu0 %v1129
        %1451 = vmatprep.subr.bf16.mxu0 %v1126
        %1452 = vmatpush1.bf16.msra.mxu0 %v1125
        %1453 = vmatprep.subr.bf16.mxu0 %v1122
        %1454 = vmatpush1.bf16.msra.mxu0 %v1121
        %1455 = vmatprep.subr.bf16.mxu0 %v1118
        %1456 = vmatpush1.bf16.msra.mxu0 %v1117
        %1457 = vmatprep.subr.bf16.mxu0 %v1114
        %1458 = vmatpush1.bf16.msra.mxu0 %v1113
        %1459 = vmatprep.subr.bf16.mxu0 %v1110
        %1460 = vmatpush1.bf16.msra.mxu0 %v1109
        %1461 = vmatprep.subr.bf16.mxu0 %v1170
        %1462 = vmatpush2.bf16.msra.mxu0 %v1169
        %1463 = vmatprep.subr.bf16.mxu0 %v1166
        %1464 = vmatpush2.bf16.msra.mxu0 %v1165
        %1465 = vmatprep.subr.bf16.mxu0 %v1162
        %1466 = vmatpush2.bf16.msra.mxu0 %v1161
        %1467 = vmatprep.subr.bf16.mxu0 %v1158
        %1468 = vmatpush2.bf16.msra.mxu0 %v1157
        %1469 = vmatprep.subr.bf16.mxu0 %v1154
        %1470 = vmatpush2.bf16.msra.mxu0 %v1153
        %1471 = vmatprep.subr.bf16.mxu0 %v1150
        %1472 = vmatpush2.bf16.msra.mxu0 %v1149
        %1473 = vmatprep.subr.bf16.mxu0 %v1146
        %1474 = vmatpush2.bf16.msra.mxu0 %v1145
        %1475 = vmatprep.subr.bf16.mxu0 %v1142
        %1476 = vmatpush2.bf16.msra.mxu0 %v1141
        %1477 = vmatprep.mubr.bf16.mxu0 %v570
        %1478 = vmatmul.mubr.bf16.gmra.mxu0 %v569
        %v1479 = vpop.f32.mrf.mxu0
        %v1480 = vadd.f32 %v714, %v1479
        %v1481 = vpop.f32.mrf.mxu0
        %v1482 = vadd.f32 %v718, %v1481
        %v1483 = vpop.f32.mrf.mxu0
        %v1484 = vpop.f32.mrf.mxu0
        %1485 = vdwg.mxu0
        %1486 = vmatprep.subr.bf16.mxu0 %v1202
        %1487 = vmatpush1.bf16.msra.mxu0 %v1201
        %1488 = vmatprep.subr.bf16.mxu0 %v1198
        %1489 = vmatpush1.bf16.msra.mxu0 %v1197
        %1490 = vmatprep.subr.bf16.mxu0 %v1194
        %1491 = vmatpush1.bf16.msra.mxu0 %v1193
        %1492 = vmatprep.subr.bf16.mxu0 %v1190
        %1493 = vmatpush1.bf16.msra.mxu0 %v1189
        %1494 = vmatprep.subr.bf16.mxu0 %v1186
        %1495 = vmatpush1.bf16.msra.mxu0 %v1185
        %1496 = vmatprep.subr.bf16.mxu0 %v1182
        %1497 = vmatpush1.bf16.msra.mxu0 %v1181
        %1498 = vmatprep.subr.bf16.mxu0 %v1178
        %1499 = vmatpush1.bf16.msra.mxu0 %v1177
        %1500 = vmatprep.subr.bf16.mxu0 %v1174
        %1501 = vmatpush1.bf16.msra.mxu0 %v1173
        %1502 = vmatprep.subr.bf16.mxu0 %v1234
        %1503 = vmatpush2.bf16.msra.mxu0 %v1233
        %1504 = vmatprep.subr.bf16.mxu0 %v1230
        %1505 = vmatpush2.bf16.msra.mxu0 %v1229
        %1506 = vmatprep.subr.bf16.mxu0 %v1226
        %1507 = vmatpush2.bf16.msra.mxu0 %v1225
        %1508 = vmatprep.subr.bf16.mxu0 %v1222
        %1509 = vmatpush2.bf16.msra.mxu0 %v1221
        %1510 = vmatprep.subr.bf16.mxu0 %v1218
        %1511 = vmatpush2.bf16.msra.mxu0 %v1217
        %1512 = vmatprep.subr.bf16.mxu0 %v1214
        %1513 = vmatpush2.bf16.msra.mxu0 %v1213
        %1514 = vmatprep.subr.bf16.mxu0 %v1210
        %1515 = vmatpush2.bf16.msra.mxu0 %v1209
        %1516 = vmatprep.subr.bf16.mxu0 %v1206
        %1517 = vmatpush2.bf16.msra.mxu0 %v1205
        %1518 = vmatprep.mubr.bf16.mxu0 %v572
        %1519 = vmatmul.mubr.bf16.gmra.mxu0 %v571
        %v1520 = vpop.f32.mrf.mxu0
        %v1521 = vadd.f32 %v1480, %v1520
        %v1522 = vpop.f32.mrf.mxu0
        %v1523 = vadd.f32 %v1482, %v1522
        %v1524 = vpop.f32.mrf.mxu0
        %v1525 = vpop.f32.mrf.mxu0
        %1526 = vdwg.mxu0
        %v1527 = vsub.f32 0.0, %v1439
        %v1528 = vsub.f32 0.0, %v1441
        %v1529 = vsub.f32 0.0, %v1521
        %v1530 = vsub.f32 0.0, %v1523
        %v1531 = vmul.f32 %v1527, 1.442695
        %v1532 = vpow.pop %v1531
        %v1533 = vmul.f32 %v1528, 1.442695
        %v1534 = vpow.pop %v1533
        %v1535 = vmul.f32 %v1529, 1.442695
        %v1536 = vpow.pop %v1535
        %v1537 = vmul.f32 %v1530, 1.442695
        %v1538 = vpow.pop %v1537
        %v1539 = vadd.f32 %v1532, 1.0
        %v1540 = vadd.f32 %v1534, 1.0
        %v1541 = vadd.f32 %v1536, 1.0
        %v1542 = vadd.f32 %v1538, 1.0
        %v1543 = vrcp.pop %v1539
        %v1544 = vrcp.pop %v1540
        %v1545 = vrcp.pop %v1541
        %v1546 = vrcp.pop %v1542
        %v1547 = vmul.f32 %v1439, %v1543
        %v1548 = vmul.f32 %v1441, %v1544
        %v1549 = vmul.f32 %v1521, %v1545
        %v1550 = vmul.f32 %v1523, %v1546
        %v1551 = vpack.c.bf16 %v1547, %v1547
        %v1552 = vpack.c.bf16 %v1548, %v1548
        %v1553 = vpack.c.bf16 %v1549, %v1549
        %v1554 = vpack.c.bf16 %v1550, %v1550
        %v1555 = vld [vmem:[#allocation6] sm:$0xff]
        %v1556 = vld [vmem:[#allocation6 + $0x8] sm:$0xff]
        %v1557 = vld [vmem:[#allocation6 + $0x10] sm:$0xff]
        %v1558 = vld [vmem:[#allocation6 + $0x18] sm:$0xff]
        %v1559 = vld [vmem:[#allocation6 + $0x20] sm:$0xff]
        %v1560 = vld [vmem:[#allocation6 + $0x28] sm:$0xff]
        %v1561 = vld [vmem:[#allocation6 + $0x30] sm:$0xff]
        %v1562 = vld [vmem:[#allocation6 + $0x38] sm:$0xff]
        %v1563 = vld [vmem:[#allocation6 + $0x40] sm:$0xff]
        %v1564 = vld [vmem:[#allocation6 + $0x48] sm:$0xff]
        %v1565 = vld [vmem:[#allocation6 + $0x50] sm:$0xff]
        %v1566 = vld [vmem:[#allocation6 + $0x58] sm:$0xff]
        %v1567 = vld [vmem:[#allocation6 + $0x60] sm:$0xff]
        %v1568 = vld [vmem:[#allocation6 + $0x68] sm:$0xff]
        %v1569 = vld [vmem:[#allocation6 + $0x70] sm:$0xff]
        %v1570 = vld [vmem:[#allocation6 + $0x78] sm:$0xff]
        %v1571 = vld [vmem:[#allocation6 + $0x80] sm:$0xff]
        %v1572 = vld [vmem:[#allocation6 + $0x88] sm:$0xff]
        %v1573 = vld [vmem:[#allocation6 + $0x90] sm:$0xff]
        %v1574 = vld [vmem:[#allocation6 + $0x98] sm:$0xff]
        %v1575 = vld [vmem:[#allocation6 + $0xa0] sm:$0xff]
        %v1576 = vld [vmem:[#allocation6 + $0xa8] sm:$0xff]
        %v1577 = vld [vmem:[#allocation6 + $0xb0] sm:$0xff]
        %v1578 = vld [vmem:[#allocation6 + $0xb8] sm:$0xff]
        %v1579 = vld [vmem:[#allocation6 + $0xc0] sm:$0xff]
        %v1580 = vld [vmem:[#allocation6 + $0xc8] sm:$0xff]
        %v1581 = vld [vmem:[#allocation6 + $0xd0] sm:$0xff]
        %v1582 = vld [vmem:[#allocation6 + $0xd8] sm:$0xff]
        %v1583 = vld [vmem:[#allocation6 + $0xe0] sm:$0xff]
        %v1584 = vld [vmem:[#allocation6 + $0xe8] sm:$0xff]
        %v1585 = vld [vmem:[#allocation6 + $0xf0] sm:$0xff]
        %v1586 = vld [vmem:[#allocation6 + $0xf8] sm:$0xff]
        %v1587 = vld [vmem:[#allocation6 + $0x100] sm:$0xff]
        %v1588 = vld [vmem:[#allocation6 + $0x108] sm:$0xff]
        %v1589 = vld [vmem:[#allocation6 + $0x110] sm:$0xff]
        %v1590 = vld [vmem:[#allocation6 + $0x118] sm:$0xff]
        %v1591 = vld [vmem:[#allocation6 + $0x120] sm:$0xff]
        %v1592 = vld [vmem:[#allocation6 + $0x128] sm:$0xff]
        %v1593 = vld [vmem:[#allocation6 + $0x130] sm:$0xff]
        %v1594 = vld [vmem:[#allocation6 + $0x138] sm:$0xff]
        %v1595 = vld [vmem:[#allocation6 + $0x140] sm:$0xff]
        %v1596 = vld [vmem:[#allocation6 + $0x148] sm:$0xff]
        %v1597 = vld [vmem:[#allocation6 + $0x150] sm:$0xff]
        %v1598 = vld [vmem:[#allocation6 + $0x158] sm:$0xff]
        %v1599 = vld [vmem:[#allocation6 + $0x160] sm:$0xff]
        %v1600 = vld [vmem:[#allocation6 + $0x168] sm:$0xff]
        %v1601 = vld [vmem:[#allocation6 + $0x170] sm:$0xff]
        %v1602 = vld [vmem:[#allocation6 + $0x178] sm:$0xff]
        %v1603 = vld [vmem:[#allocation6 + $0x180] sm:$0xff]
        %v1604 = vld [vmem:[#allocation6 + $0x188] sm:$0xff]
        %v1605 = vld [vmem:[#allocation6 + $0x190] sm:$0xff]
        %v1606 = vld [vmem:[#allocation6 + $0x198] sm:$0xff]
        %v1607 = vld [vmem:[#allocation6 + $0x1a0] sm:$0xff]
        %v1608 = vld [vmem:[#allocation6 + $0x1a8] sm:$0xff]
        %v1609 = vld [vmem:[#allocation6 + $0x1b0] sm:$0xff]
        %v1610 = vld [vmem:[#allocation6 + $0x1b8] sm:$0xff]
        %v1611 = vld [vmem:[#allocation6 + $0x1c0] sm:$0xff]
        %v1612 = vld [vmem:[#allocation6 + $0x1c8] sm:$0xff]
        %v1613 = vld [vmem:[#allocation6 + $0x1d0] sm:$0xff]
        %v1614 = vld [vmem:[#allocation6 + $0x1d8] sm:$0xff]
        %v1615 = vld [vmem:[#allocation6 + $0x1e0] sm:$0xff]
        %v1616 = vld [vmem:[#allocation6 + $0x1e8] sm:$0xff]
        %v1617 = vld [vmem:[#allocation6 + $0x1f0] sm:$0xff]
        %v1618 = vld [vmem:[#allocation6 + $0x1f8] sm:$0xff]
        %v1619 = vld [vmem:[#allocation6 + $0x200] sm:$0xff]
        %v1620 = vld [vmem:[#allocation6 + $0x208] sm:$0xff]
        %v1621 = vld [vmem:[#allocation6 + $0x210] sm:$0xff]
        %v1622 = vld [vmem:[#allocation6 + $0x218] sm:$0xff]
        %v1623 = vld [vmem:[#allocation6 + $0x220] sm:$0xff]
        %v1624 = vld [vmem:[#allocation6 + $0x228] sm:$0xff]
        %v1625 = vld [vmem:[#allocation6 + $0x230] sm:$0xff]
        %v1626 = vld [vmem:[#allocation6 + $0x238] sm:$0xff]
        %v1627 = vld [vmem:[#allocation6 + $0x240] sm:$0xff]
        %v1628 = vld [vmem:[#allocation6 + $0x248] sm:$0xff]
        %v1629 = vld [vmem:[#allocation6 + $0x250] sm:$0xff]
        %v1630 = vld [vmem:[#allocation6 + $0x258] sm:$0xff]
        %v1631 = vld [vmem:[#allocation6 + $0x260] sm:$0xff]
        %v1632 = vld [vmem:[#allocation6 + $0x268] sm:$0xff]
        %v1633 = vld [vmem:[#allocation6 + $0x270] sm:$0xff]
        %v1634 = vld [vmem:[#allocation6 + $0x278] sm:$0xff]
        %v1635 = vld [vmem:[#allocation6 + $0x280] sm:$0xff]
        %v1636 = vld [vmem:[#allocation6 + $0x288] sm:$0xff]
        %v1637 = vld [vmem:[#allocation6 + $0x290] sm:$0xff]
        %v1638 = vld [vmem:[#allocation6 + $0x298] sm:$0xff]
        %v1639 = vld [vmem:[#allocation6 + $0x2a0] sm:$0xff]
        %v1640 = vld [vmem:[#allocation6 + $0x2a8] sm:$0xff]
        %v1641 = vld [vmem:[#allocation6 + $0x2b0] sm:$0xff]
        %v1642 = vld [vmem:[#allocation6 + $0x2b8] sm:$0xff]
        %v1643 = vld [vmem:[#allocation6 + $0x2c0] sm:$0xff]
        %v1644 = vld [vmem:[#allocation6 + $0x2c8] sm:$0xff]
        %v1645 = vld [vmem:[#allocation6 + $0x2d0] sm:$0xff]
        %v1646 = vld [vmem:[#allocation6 + $0x2d8] sm:$0xff]
        %v1647 = vld [vmem:[#allocation6 + $0x2e0] sm:$0xff]
        %v1648 = vld [vmem:[#allocation6 + $0x2e8] sm:$0xff]
        %v1649 = vld [vmem:[#allocation6 + $0x2f0] sm:$0xff]
        %v1650 = vld [vmem:[#allocation6 + $0x2f8] sm:$0xff]
        %v1651 = vld [vmem:[#allocation6 + $0x300] sm:$0xff]
        %v1652 = vld [vmem:[#allocation6 + $0x308] sm:$0xff]
        %v1653 = vld [vmem:[#allocation6 + $0x310] sm:$0xff]
        %v1654 = vld [vmem:[#allocation6 + $0x318] sm:$0xff]
        %v1655 = vld [vmem:[#allocation6 + $0x320] sm:$0xff]
        %v1656 = vld [vmem:[#allocation6 + $0x328] sm:$0xff]
        %v1657 = vld [vmem:[#allocation6 + $0x330] sm:$0xff]
        %v1658 = vld [vmem:[#allocation6 + $0x338] sm:$0xff]
        %v1659 = vld [vmem:[#allocation6 + $0x340] sm:$0xff]
        %v1660 = vld [vmem:[#allocation6 + $0x348] sm:$0xff]
        %v1661 = vld [vmem:[#allocation6 + $0x350] sm:$0xff]
        %v1662 = vld [vmem:[#allocation6 + $0x358] sm:$0xff]
        %v1663 = vld [vmem:[#allocation6 + $0x360] sm:$0xff]
        %v1664 = vld [vmem:[#allocation6 + $0x368] sm:$0xff]
        %v1665 = vld [vmem:[#allocation6 + $0x370] sm:$0xff]
        %v1666 = vld [vmem:[#allocation6 + $0x378] sm:$0xff]
        %v1667 = vld [vmem:[#allocation6 + $0x380] sm:$0xff]
        %v1668 = vld [vmem:[#allocation6 + $0x388] sm:$0xff]
        %v1669 = vld [vmem:[#allocation6 + $0x390] sm:$0xff]
        %v1670 = vld [vmem:[#allocation6 + $0x398] sm:$0xff]
        %v1671 = vld [vmem:[#allocation6 + $0x3a0] sm:$0xff]
        %v1672 = vld [vmem:[#allocation6 + $0x3a8] sm:$0xff]
        %v1673 = vld [vmem:[#allocation6 + $0x3b0] sm:$0xff]
        %v1674 = vld [vmem:[#allocation6 + $0x3b8] sm:$0xff]
        %v1675 = vld [vmem:[#allocation6 + $0x3c0] sm:$0xff]
        %v1676 = vld [vmem:[#allocation6 + $0x3c8] sm:$0xff]
        %v1677 = vld [vmem:[#allocation6 + $0x3d0] sm:$0xff]
        %v1678 = vld [vmem:[#allocation6 + $0x3d8] sm:$0xff]
        %v1679 = vld [vmem:[#allocation6 + $0x3e0] sm:$0xff]
        %v1680 = vld [vmem:[#allocation6 + $0x3e8] sm:$0xff]
        %v1681 = vld [vmem:[#allocation6 + $0x3f0] sm:$0xff]
        %v1682 = vld [vmem:[#allocation6 + $0x3f8] sm:$0xff]
        %v1683 = vld [vmem:[%s6] sm:$0xf]
        %v1685 = vlaneseq
        %v1686 = vshrl.u32 %v1685, 7
        %v1687 = vsub.s32 0, %v1686
        %v1688 = vrot.slane %v1683, %v1687
        %v1689 = vlaneseq
        %v1690 = vshrl.u32 %v1689, 7
        %v1691 = vsub.s32 1, %v1690
        %v1692 = vrot.slane %v1683, %v1691
        %v1693 = vlaneseq
        %v1694 = vshrl.u32 %v1693, 7
        %v1695 = vsub.s32 2, %v1694
        %v1696 = vrot.slane %v1683, %v1695
        %v1697 = vlaneseq
        %v1698 = vshrl.u32 %v1697, 7
        %v1699 = vsub.s32 3, %v1698
        %v1700 = vrot.slane %v1683, %v1699
        %v1833 = vunpack.c.l.b16 %v1555
        %v1834 = vunpack.c.h.b16 %v1555
        %v1835 = vunpack.c.l.b16 %v1556
        %v1836 = vunpack.c.h.b16 %v1556
        %v1837 = vunpack.c.l.b16 %v1557
        %v1838 = vunpack.c.h.b16 %v1557
        %v1839 = vunpack.c.l.b16 %v1558
        %v1840 = vunpack.c.h.b16 %v1558
        %v1841 = vunpack.c.l.b16 %v1559
        %v1842 = vunpack.c.h.b16 %v1559
        %v1843 = vunpack.c.l.b16 %v1560
        %v1844 = vunpack.c.h.b16 %v1560
        %v1845 = vunpack.c.l.b16 %v1561
        %v1846 = vunpack.c.h.b16 %v1561
        %v1847 = vunpack.c.l.b16 %v1562
        %v1848 = vunpack.c.h.b16 %v1562
        %v1849 = vunpack.c.l.b16 %v1563
        %v1850 = vunpack.c.h.b16 %v1563
        %v1851 = vunpack.c.l.b16 %v1564
        %v1852 = vunpack.c.h.b16 %v1564
        %v1853 = vunpack.c.l.b16 %v1565
        %v1854 = vunpack.c.h.b16 %v1565
        %v1855 = vunpack.c.l.b16 %v1566
        %v1856 = vunpack.c.h.b16 %v1566
        %v1857 = vunpack.c.l.b16 %v1567
        %v1858 = vunpack.c.h.b16 %v1567
        %v1859 = vunpack.c.l.b16 %v1568
        %v1860 = vunpack.c.h.b16 %v1568
        %v1861 = vunpack.c.l.b16 %v1569
        %v1862 = vunpack.c.h.b16 %v1569
        %v1863 = vunpack.c.l.b16 %v1570
        %v1864 = vunpack.c.h.b16 %v1570
        %v1865 = vunpack.c.l.b16 %v1571
        %v1866 = vunpack.c.h.b16 %v1571
        %v1867 = vunpack.c.l.b16 %v1572
        %v1868 = vunpack.c.h.b16 %v1572
        %v1869 = vunpack.c.l.b16 %v1573
        %v1870 = vunpack.c.h.b16 %v1573
        %v1871 = vunpack.c.l.b16 %v1574
        %v1872 = vunpack.c.h.b16 %v1574
        %v1873 = vunpack.c.l.b16 %v1575
        %v1874 = vunpack.c.h.b16 %v1575
        %v1875 = vunpack.c.l.b16 %v1576
        %v1876 = vunpack.c.h.b16 %v1576
        %v1877 = vunpack.c.l.b16 %v1577
        %v1878 = vunpack.c.h.b16 %v1577
        %v1879 = vunpack.c.l.b16 %v1578
        %v1880 = vunpack.c.h.b16 %v1578
        %v1881 = vunpack.c.l.b16 %v1579
        %v1882 = vunpack.c.h.b16 %v1579
        %v1883 = vunpack.c.l.b16 %v1580
        %v1884 = vunpack.c.h.b16 %v1580
        %v1885 = vunpack.c.l.b16 %v1581
        %v1886 = vunpack.c.h.b16 %v1581
        %v1887 = vunpack.c.l.b16 %v1582
        %v1888 = vunpack.c.h.b16 %v1582
        %v1889 = vunpack.c.l.b16 %v1583
        %v1890 = vunpack.c.h.b16 %v1583
        %v1891 = vunpack.c.l.b16 %v1584
        %v1892 = vunpack.c.h.b16 %v1584
        %v1893 = vunpack.c.l.b16 %v1585
        %v1894 = vunpack.c.h.b16 %v1585
        %v1895 = vunpack.c.l.b16 %v1586
        %v1896 = vunpack.c.h.b16 %v1586
        %v1897 = vunpack.c.l.b16 %v1587
        %v1898 = vunpack.c.h.b16 %v1587
        %v1899 = vunpack.c.l.b16 %v1588
        %v1900 = vunpack.c.h.b16 %v1588
        %v1901 = vunpack.c.l.b16 %v1589
        %v1902 = vunpack.c.h.b16 %v1589
        %v1903 = vunpack.c.l.b16 %v1590
        %v1904 = vunpack.c.h.b16 %v1590
        %v1905 = vunpack.c.l.b16 %v1591
        %v1906 = vunpack.c.h.b16 %v1591
        %v1907 = vunpack.c.l.b16 %v1592
        %v1908 = vunpack.c.h.b16 %v1592
        %v1909 = vunpack.c.l.b16 %v1593
        %v1910 = vunpack.c.h.b16 %v1593
        %v1911 = vunpack.c.l.b16 %v1594
        %v1912 = vunpack.c.h.b16 %v1594
        %v1913 = vunpack.c.l.b16 %v1595
        %v1914 = vunpack.c.h.b16 %v1595
        %v1915 = vunpack.c.l.b16 %v1596
        %v1916 = vunpack.c.h.b16 %v1596
        %v1917 = vunpack.c.l.b16 %v1597
        %v1918 = vunpack.c.h.b16 %v1597
        %v1919 = vunpack.c.l.b16 %v1598
        %v1920 = vunpack.c.h.b16 %v1598
        %v1921 = vunpack.c.l.b16 %v1599
        %v1922 = vunpack.c.h.b16 %v1599
        %v1923 = vunpack.c.l.b16 %v1600
        %v1924 = vunpack.c.h.b16 %v1600
        %v1925 = vunpack.c.l.b16 %v1601
        %v1926 = vunpack.c.h.b16 %v1601
        %v1927 = vunpack.c.l.b16 %v1602
        %v1928 = vunpack.c.h.b16 %v1602
        %v1929 = vunpack.c.l.b16 %v1603
        %v1930 = vunpack.c.h.b16 %v1603
        %v1931 = vunpack.c.l.b16 %v1604
        %v1932 = vunpack.c.h.b16 %v1604
        %v1933 = vunpack.c.l.b16 %v1605
        %v1934 = vunpack.c.h.b16 %v1605
        %v1935 = vunpack.c.l.b16 %v1606
        %v1936 = vunpack.c.h.b16 %v1606
        %v1937 = vunpack.c.l.b16 %v1607
        %v1938 = vunpack.c.h.b16 %v1607
        %v1939 = vunpack.c.l.b16 %v1608
        %v1940 = vunpack.c.h.b16 %v1608
        %v1941 = vunpack.c.l.b16 %v1609
        %v1942 = vunpack.c.h.b16 %v1609
        %v1943 = vunpack.c.l.b16 %v1610
        %v1944 = vunpack.c.h.b16 %v1610
        %v1945 = vunpack.c.l.b16 %v1611
        %v1946 = vunpack.c.h.b16 %v1611
        %v1947 = vunpack.c.l.b16 %v1612
        %v1948 = vunpack.c.h.b16 %v1612
        %v1949 = vunpack.c.l.b16 %v1613
        %v1950 = vunpack.c.h.b16 %v1613
        %v1951 = vunpack.c.l.b16 %v1614
        %v1952 = vunpack.c.h.b16 %v1614
        %v1953 = vunpack.c.l.b16 %v1615
        %v1954 = vunpack.c.h.b16 %v1615
        %v1955 = vunpack.c.l.b16 %v1616
        %v1956 = vunpack.c.h.b16 %v1616
        %v1957 = vunpack.c.l.b16 %v1617
        %v1958 = vunpack.c.h.b16 %v1617
        %v1959 = vunpack.c.l.b16 %v1618
        %v1960 = vunpack.c.h.b16 %v1618
        %v1961 = vunpack.c.l.b16 %v1619
        %v1962 = vunpack.c.h.b16 %v1619
        %v1963 = vunpack.c.l.b16 %v1620
        %v1964 = vunpack.c.h.b16 %v1620
        %v1965 = vunpack.c.l.b16 %v1621
        %v1966 = vunpack.c.h.b16 %v1621
        %v1967 = vunpack.c.l.b16 %v1622
        %v1968 = vunpack.c.h.b16 %v1622
        %v1969 = vunpack.c.l.b16 %v1623
        %v1970 = vunpack.c.h.b16 %v1623
        %v1971 = vunpack.c.l.b16 %v1624
        %v1972 = vunpack.c.h.b16 %v1624
        %v1973 = vunpack.c.l.b16 %v1625
        %v1974 = vunpack.c.h.b16 %v1625
        %v1975 = vunpack.c.l.b16 %v1626
        %v1976 = vunpack.c.h.b16 %v1626
        %v1977 = vunpack.c.l.b16 %v1627
        %v1978 = vunpack.c.h.b16 %v1627
        %v1979 = vunpack.c.l.b16 %v1628
        %v1980 = vunpack.c.h.b16 %v1628
        %v1981 = vunpack.c.l.b16 %v1629
        %v1982 = vunpack.c.h.b16 %v1629
        %v1983 = vunpack.c.l.b16 %v1630
        %v1984 = vunpack.c.h.b16 %v1630
        %v1985 = vunpack.c.l.b16 %v1631
        %v1986 = vunpack.c.h.b16 %v1631
        %v1987 = vunpack.c.l.b16 %v1632
        %v1988 = vunpack.c.h.b16 %v1632
        %v1989 = vunpack.c.l.b16 %v1633
        %v1990 = vunpack.c.h.b16 %v1633
        %v1991 = vunpack.c.l.b16 %v1634
        %v1992 = vunpack.c.h.b16 %v1634
        %v1993 = vunpack.c.l.b16 %v1635
        %v1994 = vunpack.c.h.b16 %v1635
        %v1995 = vunpack.c.l.b16 %v1636
        %v1996 = vunpack.c.h.b16 %v1636
        %v1997 = vunpack.c.l.b16 %v1637
        %v1998 = vunpack.c.h.b16 %v1637
        %v1999 = vunpack.c.l.b16 %v1638
        %v2000 = vunpack.c.h.b16 %v1638
        %v2001 = vunpack.c.l.b16 %v1639
        %v2002 = vunpack.c.h.b16 %v1639
        %v2003 = vunpack.c.l.b16 %v1640
        %v2004 = vunpack.c.h.b16 %v1640
        %v2005 = vunpack.c.l.b16 %v1641
        %v2006 = vunpack.c.h.b16 %v1641
        %v2007 = vunpack.c.l.b16 %v1642
        %v2008 = vunpack.c.h.b16 %v1642
        %v2009 = vunpack.c.l.b16 %v1643
        %v2010 = vunpack.c.h.b16 %v1643
        %v2011 = vunpack.c.l.b16 %v1644
        %v2012 = vunpack.c.h.b16 %v1644
        %v2013 = vunpack.c.l.b16 %v1645
        %v2014 = vunpack.c.h.b16 %v1645
        %v2015 = vunpack.c.l.b16 %v1646
        %v2016 = vunpack.c.h.b16 %v1646
        %v2017 = vunpack.c.l.b16 %v1647
        %v2018 = vunpack.c.h.b16 %v1647
        %v2019 = vunpack.c.l.b16 %v1648
        %v2020 = vunpack.c.h.b16 %v1648
        %v2021 = vunpack.c.l.b16 %v1649
        %v2022 = vunpack.c.h.b16 %v1649
        %v2023 = vunpack.c.l.b16 %v1650
        %v2024 = vunpack.c.h.b16 %v1650
        %v2025 = vunpack.c.l.b16 %v1651
        %v2026 = vunpack.c.h.b16 %v1651
        %v2027 = vunpack.c.l.b16 %v1652
        %v2028 = vunpack.c.h.b16 %v1652
        %v2029 = vunpack.c.l.b16 %v1653
        %v2030 = vunpack.c.h.b16 %v1653
        %v2031 = vunpack.c.l.b16 %v1654
        %v2032 = vunpack.c.h.b16 %v1654
        %v2033 = vunpack.c.l.b16 %v1655
        %v2034 = vunpack.c.h.b16 %v1655
        %v2035 = vunpack.c.l.b16 %v1656
        %v2036 = vunpack.c.h.b16 %v1656
        %v2037 = vunpack.c.l.b16 %v1657
        %v2038 = vunpack.c.h.b16 %v1657
        %v2039 = vunpack.c.l.b16 %v1658
        %v2040 = vunpack.c.h.b16 %v1658
        %v2041 = vunpack.c.l.b16 %v1659
        %v2042 = vunpack.c.h.b16 %v1659
        %v2043 = vunpack.c.l.b16 %v1660
        %v2044 = vunpack.c.h.b16 %v1660
        %v2045 = vunpack.c.l.b16 %v1661
        %v2046 = vunpack.c.h.b16 %v1661
        %v2047 = vunpack.c.l.b16 %v1662
        %v2048 = vunpack.c.h.b16 %v1662
        %v2049 = vunpack.c.l.b16 %v1663
        %v2050 = vunpack.c.h.b16 %v1663
        %v2051 = vunpack.c.l.b16 %v1664
        %v2052 = vunpack.c.h.b16 %v1664
        %v2053 = vunpack.c.l.b16 %v1665
        %v2054 = vunpack.c.h.b16 %v1665
        %v2055 = vunpack.c.l.b16 %v1666
        %v2056 = vunpack.c.h.b16 %v1666
        %v2057 = vunpack.c.l.b16 %v1667
        %v2058 = vunpack.c.h.b16 %v1667
        %v2059 = vunpack.c.l.b16 %v1668
        %v2060 = vunpack.c.h.b16 %v1668
        %v2061 = vunpack.c.l.b16 %v1669
        %v2062 = vunpack.c.h.b16 %v1669
        %v2063 = vunpack.c.l.b16 %v1670
        %v2064 = vunpack.c.h.b16 %v1670
        %v2065 = vunpack.c.l.b16 %v1671
        %v2066 = vunpack.c.h.b16 %v1671
        %v2067 = vunpack.c.l.b16 %v1672
        %v2068 = vunpack.c.h.b16 %v1672
        %v2069 = vunpack.c.l.b16 %v1673
        %v2070 = vunpack.c.h.b16 %v1673
        %v2071 = vunpack.c.l.b16 %v1674
        %v2072 = vunpack.c.h.b16 %v1674
        %v2073 = vunpack.c.l.b16 %v1675
        %v2074 = vunpack.c.h.b16 %v1675
        %v2075 = vunpack.c.l.b16 %v1676
        %v2076 = vunpack.c.h.b16 %v1676
        %v2077 = vunpack.c.l.b16 %v1677
        %v2078 = vunpack.c.h.b16 %v1677
        %v2079 = vunpack.c.l.b16 %v1678
        %v2080 = vunpack.c.h.b16 %v1678
        %v2081 = vunpack.c.l.b16 %v1679
        %v2082 = vunpack.c.h.b16 %v1679
        %v2083 = vunpack.c.l.b16 %v1680
        %v2084 = vunpack.c.h.b16 %v1680
        %v2085 = vunpack.c.l.b16 %v1681
        %v2086 = vunpack.c.h.b16 %v1681
        %v2087 = vunpack.c.l.b16 %v1682
        %v2088 = vunpack.c.h.b16 %v1682
        %v2089 = vpack.c.b16 %v1837, %v1833
        %v2090 = vpack.c.b16 %v1838, %v1834
        %v2091 = vpack.c.b16 %v1839, %v1835
        %v2092 = vpack.c.b16 %v1840, %v1836
        %v2093 = vpack.c.b16 %v1845, %v1841
        %v2094 = vpack.c.b16 %v1846, %v1842
        %v2095 = vpack.c.b16 %v1847, %v1843
        %v2096 = vpack.c.b16 %v1848, %v1844
        %v2097 = vpack.c.b16 %v1853, %v1849
        %v2098 = vpack.c.b16 %v1854, %v1850
        %v2099 = vpack.c.b16 %v1855, %v1851
        %v2100 = vpack.c.b16 %v1856, %v1852
        %v2101 = vpack.c.b16 %v1861, %v1857
        %v2102 = vpack.c.b16 %v1862, %v1858
        %v2103 = vpack.c.b16 %v1863, %v1859
        %v2104 = vpack.c.b16 %v1864, %v1860
        %v2105 = vpack.c.b16 %v1869, %v1865
        %v2106 = vpack.c.b16 %v1870, %v1866
        %v2107 = vpack.c.b16 %v1871, %v1867
        %v2108 = vpack.c.b16 %v1872, %v1868
        %v2109 = vpack.c.b16 %v1877, %v1873
        %v2110 = vpack.c.b16 %v1878, %v1874
        %v2111 = vpack.c.b16 %v1879, %v1875
        %v2112 = vpack.c.b16 %v1880, %v1876
        %v2113 = vpack.c.b16 %v1885, %v1881
        %v2114 = vpack.c.b16 %v1886, %v1882
        %v2115 = vpack.c.b16 %v1887, %v1883
        %v2116 = vpack.c.b16 %v1888, %v1884
        %v2117 = vpack.c.b16 %v1893, %v1889
        %v2118 = vpack.c.b16 %v1894, %v1890
        %v2119 = vpack.c.b16 %v1895, %v1891
        %v2120 = vpack.c.b16 %v1896, %v1892
        %v2121 = vpack.c.b16 %v1901, %v1897
        %v2122 = vpack.c.b16 %v1902, %v1898
        %v2123 = vpack.c.b16 %v1903, %v1899
        %v2124 = vpack.c.b16 %v1904, %v1900
        %v2125 = vpack.c.b16 %v1909, %v1905
        %v2126 = vpack.c.b16 %v1910, %v1906
        %v2127 = vpack.c.b16 %v1911, %v1907
        %v2128 = vpack.c.b16 %v1912, %v1908
        %v2129 = vpack.c.b16 %v1917, %v1913
        %v2130 = vpack.c.b16 %v1918, %v1914
        %v2131 = vpack.c.b16 %v1919, %v1915
        %v2132 = vpack.c.b16 %v1920, %v1916
        %v2133 = vpack.c.b16 %v1925, %v1921
        %v2134 = vpack.c.b16 %v1926, %v1922
        %v2135 = vpack.c.b16 %v1927, %v1923
        %v2136 = vpack.c.b16 %v1928, %v1924
        %v2137 = vpack.c.b16 %v1933, %v1929
        %v2138 = vpack.c.b16 %v1934, %v1930
        %v2139 = vpack.c.b16 %v1935, %v1931
        %v2140 = vpack.c.b16 %v1936, %v1932
        %v2141 = vpack.c.b16 %v1941, %v1937
        %v2142 = vpack.c.b16 %v1942, %v1938
        %v2143 = vpack.c.b16 %v1943, %v1939
        %v2144 = vpack.c.b16 %v1944, %v1940
        %v2145 = vpack.c.b16 %v1949, %v1945
        %v2146 = vpack.c.b16 %v1950, %v1946
        %v2147 = vpack.c.b16 %v1951, %v1947
        %v2148 = vpack.c.b16 %v1952, %v1948
        %v2149 = vpack.c.b16 %v1957, %v1953
        %v2150 = vpack.c.b16 %v1958, %v1954
        %v2151 = vpack.c.b16 %v1959, %v1955
        %v2152 = vpack.c.b16 %v1960, %v1956
        %v2153 = vpack.c.b16 %v1965, %v1961
        %v2154 = vpack.c.b16 %v1966, %v1962
        %v2155 = vpack.c.b16 %v1967, %v1963
        %v2156 = vpack.c.b16 %v1968, %v1964
        %v2157 = vpack.c.b16 %v1973, %v1969
        %v2158 = vpack.c.b16 %v1974, %v1970
        %v2159 = vpack.c.b16 %v1975, %v1971
        %v2160 = vpack.c.b16 %v1976, %v1972
        %v2161 = vpack.c.b16 %v1981, %v1977
        %v2162 = vpack.c.b16 %v1982, %v1978
        %v2163 = vpack.c.b16 %v1983, %v1979
        %v2164 = vpack.c.b16 %v1984, %v1980
        %v2165 = vpack.c.b16 %v1989, %v1985
        %v2166 = vpack.c.b16 %v1990, %v1986
        %v2167 = vpack.c.b16 %v1991, %v1987
        %v2168 = vpack.c.b16 %v1992, %v1988
        %v2169 = vpack.c.b16 %v1997, %v1993
        %v2170 = vpack.c.b16 %v1998, %v1994
        %v2171 = vpack.c.b16 %v1999, %v1995
        %v2172 = vpack.c.b16 %v2000, %v1996
        %v2173 = vpack.c.b16 %v2005, %v2001
        %v2174 = vpack.c.b16 %v2006, %v2002
        %v2175 = vpack.c.b16 %v2007, %v2003
        %v2176 = vpack.c.b16 %v2008, %v2004
        %v2177 = vpack.c.b16 %v2013, %v2009
        %v2178 = vpack.c.b16 %v2014, %v2010
        %v2179 = vpack.c.b16 %v2015, %v2011
        %v2180 = vpack.c.b16 %v2016, %v2012
        %v2181 = vpack.c.b16 %v2021, %v2017
        %v2182 = vpack.c.b16 %v2022, %v2018
        %v2183 = vpack.c.b16 %v2023, %v2019
        %v2184 = vpack.c.b16 %v2024, %v2020
        %v2185 = vpack.c.b16 %v2029, %v2025
        %v2186 = vpack.c.b16 %v2030, %v2026
        %v2187 = vpack.c.b16 %v2031, %v2027
        %v2188 = vpack.c.b16 %v2032, %v2028
        %v2189 = vpack.c.b16 %v2037, %v2033
        %v2190 = vpack.c.b16 %v2038, %v2034
        %v2191 = vpack.c.b16 %v2039, %v2035
        %v2192 = vpack.c.b16 %v2040, %v2036
        %v2193 = vpack.c.b16 %v2045, %v2041
        %v2194 = vpack.c.b16 %v2046, %v2042
        %v2195 = vpack.c.b16 %v2047, %v2043
        %v2196 = vpack.c.b16 %v2048, %v2044
        %v2197 = vpack.c.b16 %v2053, %v2049
        %v2198 = vpack.c.b16 %v2054, %v2050
        %v2199 = vpack.c.b16 %v2055, %v2051
        %v2200 = vpack.c.b16 %v2056, %v2052
        %v2201 = vpack.c.b16 %v2061, %v2057
        %v2202 = vpack.c.b16 %v2062, %v2058
        %v2203 = vpack.c.b16 %v2063, %v2059
        %v2204 = vpack.c.b16 %v2064, %v2060
        %v2205 = vpack.c.b16 %v2069, %v2065
        %v2206 = vpack.c.b16 %v2070, %v2066
        %v2207 = vpack.c.b16 %v2071, %v2067
        %v2208 = vpack.c.b16 %v2072, %v2068
        %v2209 = vpack.c.b16 %v2077, %v2073
        %v2210 = vpack.c.b16 %v2078, %v2074
        %v2211 = vpack.c.b16 %v2079, %v2075
        %v2212 = vpack.c.b16 %v2080, %v2076
        %v2213 = vpack.c.b16 %v2085, %v2081
        %v2214 = vpack.c.b16 %v2086, %v2082
        %v2215 = vpack.c.b16 %v2087, %v2083
        %v2216 = vpack.c.b16 %v2088, %v2084
        %2345 = vmatprep.subr.bf16.mxu0 %v2118
        %2346 = vmatpush1.bf16.msra.mxu0 %v2117
        %2347 = vmatprep.subr.bf16.mxu0 %v2114
        %2348 = vmatpush1.bf16.msra.mxu0 %v2113
        %2349 = vmatprep.subr.bf16.mxu0 %v2110
        %2350 = vmatpush1.bf16.msra.mxu0 %v2109
        %2351 = vmatprep.subr.bf16.mxu0 %v2106
        %2352 = vmatpush1.bf16.msra.mxu0 %v2105
        %2353 = vmatprep.subr.bf16.mxu0 %v2102
        %2354 = vmatpush1.bf16.msra.mxu0 %v2101
        %2355 = vmatprep.subr.bf16.mxu0 %v2098
        %2356 = vmatpush1.bf16.msra.mxu0 %v2097
        %2357 = vmatprep.subr.bf16.mxu0 %v2094
        %2358 = vmatpush1.bf16.msra.mxu0 %v2093
        %2359 = vmatprep.subr.bf16.mxu0 %v2090
        %2360 = vmatpush1.bf16.msra.mxu0 %v2089
        %2361 = vmatprep.subr.bf16.mxu0 %v2150
        %2362 = vmatpush2.bf16.msra.mxu0 %v2149
        %2363 = vmatprep.subr.bf16.mxu0 %v2146
        %2364 = vmatpush2.bf16.msra.mxu0 %v2145
        %2365 = vmatprep.subr.bf16.mxu0 %v2142
        %2366 = vmatpush2.bf16.msra.mxu0 %v2141
        %2367 = vmatprep.subr.bf16.mxu0 %v2138
        %2368 = vmatpush2.bf16.msra.mxu0 %v2137
        %2369 = vmatprep.subr.bf16.mxu0 %v2134
        %2370 = vmatpush2.bf16.msra.mxu0 %v2133
        %2371 = vmatprep.subr.bf16.mxu0 %v2130
        %2372 = vmatpush2.bf16.msra.mxu0 %v2129
        %2373 = vmatprep.subr.bf16.mxu0 %v2126
        %2374 = vmatpush2.bf16.msra.mxu0 %v2125
        %2375 = vmatprep.subr.bf16.mxu0 %v2122
        %2376 = vmatpush2.bf16.msra.mxu0 %v2121
        %2377 = vmatprep.mubr.bf16.mxu0 %v1552
        %2378 = vmatmul.mubr.bf16.gmra.mxu0 %v1551
        %v2379 = vpop.f32.mrf.mxu0
        %v2380 = vadd.f32 %v1688, %v2379
        %v2381 = vpop.f32.mrf.mxu0
        %v2382 = vadd.f32 %v1692, %v2381
        %v2383 = vpop.f32.mrf.mxu0
        %v2384 = vpop.f32.mrf.mxu0
        %2385 = vdwg.mxu0
        %2386 = vmatprep.subr.bf16.mxu0 %v2182
        %2387 = vmatpush1.bf16.msra.mxu0 %v2181
        %2388 = vmatprep.subr.bf16.mxu0 %v2178
        %2389 = vmatpush1.bf16.msra.mxu0 %v2177
        %2390 = vmatprep.subr.bf16.mxu0 %v2174
        %2391 = vmatpush1.bf16.msra.mxu0 %v2173
        %2392 = vmatprep.subr.bf16.mxu0 %v2170
        %2393 = vmatpush1.bf16.msra.mxu0 %v2169
        %2394 = vmatprep.subr.bf16.mxu0 %v2166
        %2395 = vmatpush1.bf16.msra.mxu0 %v2165
        %2396 = vmatprep.subr.bf16.mxu0 %v2162
        %2397 = vmatpush1.bf16.msra.mxu0 %v2161
        %2398 = vmatprep.subr.bf16.mxu0 %v2158
        %2399 = vmatpush1.bf16.msra.mxu0 %v2157
        %2400 = vmatprep.subr.bf16.mxu0 %v2154
        %2401 = vmatpush1.bf16.msra.mxu0 %v2153
        %2402 = vmatprep.subr.bf16.mxu0 %v2214
        %2403 = vmatpush2.bf16.msra.mxu0 %v2213
        %2404 = vmatprep.subr.bf16.mxu0 %v2210
        %2405 = vmatpush2.bf16.msra.mxu0 %v2209
        %2406 = vmatprep.subr.bf16.mxu0 %v2206
        %2407 = vmatpush2.bf16.msra.mxu0 %v2205
        %2408 = vmatprep.subr.bf16.mxu0 %v2202
        %2409 = vmatpush2.bf16.msra.mxu0 %v2201
        %2410 = vmatprep.subr.bf16.mxu0 %v2198
        %2411 = vmatpush2.bf16.msra.mxu0 %v2197
        %2412 = vmatprep.subr.bf16.mxu0 %v2194
        %2413 = vmatpush2.bf16.msra.mxu0 %v2193
        %2414 = vmatprep.subr.bf16.mxu0 %v2190
        %2415 = vmatpush2.bf16.msra.mxu0 %v2189
        %2416 = vmatprep.subr.bf16.mxu0 %v2186
        %2417 = vmatpush2.bf16.msra.mxu0 %v2185
        %2418 = vmatprep.mubr.bf16.mxu0 %v1554
        %2419 = vmatmul.mubr.bf16.gmra.mxu0 %v1553
        %v2420 = vpop.f32.mrf.mxu0
        %v2421 = vadd.f32 %v2380, %v2420
        %v2422 = vpop.f32.mrf.mxu0
        %v2423 = vadd.f32 %v2382, %v2422
        %v2424 = vpop.f32.mrf.mxu0
        %v2425 = vpop.f32.mrf.mxu0
        %2426 = vdwg.mxu0
        %2427 = vmatprep.subr.bf16.mxu0 %v2120
        %2428 = vmatpush1.bf16.msra.mxu0 %v2119
        %2429 = vmatprep.subr.bf16.mxu0 %v2116
        %2430 = vmatpush1.bf16.msra.mxu0 %v2115
        %2431 = vmatprep.subr.bf16.mxu0 %v2112
        %2432 = vmatpush1.bf16.msra.mxu0 %v2111
        %2433 = vmatprep.subr.bf16.mxu0 %v2108
        %2434 = vmatpush1.bf16.msra.mxu0 %v2107
        %2435 = vmatprep.subr.bf16.mxu0 %v2104
        %2436 = vmatpush1.bf16.msra.mxu0 %v2103
        %2437 = vmatprep.subr.bf16.mxu0 %v2100
        %2438 = vmatpush1.bf16.msra.mxu0 %v2099
        %2439 = vmatprep.subr.bf16.mxu0 %v2096
        %2440 = vmatpush1.bf16.msra.mxu0 %v2095
        %2441 = vmatprep.subr.bf16.mxu0 %v2092
        %2442 = vmatpush1.bf16.msra.mxu0 %v2091
        %2443 = vmatprep.subr.bf16.mxu0 %v2152
        %2444 = vmatpush2.bf16.msra.mxu0 %v2151
        %2445 = vmatprep.subr.bf16.mxu0 %v2148
        %2446 = vmatpush2.bf16.msra.mxu0 %v2147
        %2447 = vmatprep.subr.bf16.mxu0 %v2144
        %2448 = vmatpush2.bf16.msra.mxu0 %v2143
        %2449 = vmatprep.subr.bf16.mxu0 %v2140
        %2450 = vmatpush2.bf16.msra.mxu0 %v2139
        %2451 = vmatprep.subr.bf16.mxu0 %v2136
        %2452 = vmatpush2.bf16.msra.mxu0 %v2135
        %2453 = vmatprep.subr.bf16.mxu0 %v2132
        %2454 = vmatpush2.bf16.msra.mxu0 %v2131
        %2455 = vmatprep.subr.bf16.mxu0 %v2128
        %2456 = vmatpush2.bf16.msra.mxu0 %v2127
        %2457 = vmatprep.subr.bf16.mxu0 %v2124
        %2458 = vmatpush2.bf16.msra.mxu0 %v2123
        %2459 = vmatprep.mubr.bf16.mxu0 %v1552
        %2460 = vmatmul.mubr.bf16.gmra.mxu0 %v1551
        %v2461 = vpop.f32.mrf.mxu0
        %v2462 = vadd.f32 %v1696, %v2461
        %v2463 = vpop.f32.mrf.mxu0
        %v2464 = vadd.f32 %v1700, %v2463
        %v2465 = vpop.f32.mrf.mxu0
        %v2466 = vpop.f32.mrf.mxu0
        %2467 = vdwg.mxu0
        %2468 = vmatprep.subr.bf16.mxu0 %v2184
        %2469 = vmatpush1.bf16.msra.mxu0 %v2183
        %2470 = vmatprep.subr.bf16.mxu0 %v2180
        %2471 = vmatpush1.bf16.msra.mxu0 %v2179
        %2472 = vmatprep.subr.bf16.mxu0 %v2176
        %2473 = vmatpush1.bf16.msra.mxu0 %v2175
        %2474 = vmatprep.subr.bf16.mxu0 %v2172
        %2475 = vmatpush1.bf16.msra.mxu0 %v2171
        %2476 = vmatprep.subr.bf16.mxu0 %v2168
        %2477 = vmatpush1.bf16.msra.mxu0 %v2167
        %2478 = vmatprep.subr.bf16.mxu0 %v2164
        %2479 = vmatpush1.bf16.msra.mxu0 %v2163
        %2480 = vmatprep.subr.bf16.mxu0 %v2160
        %2481 = vmatpush1.bf16.msra.mxu0 %v2159
        %2482 = vmatprep.subr.bf16.mxu0 %v2156
        %2483 = vmatpush1.bf16.msra.mxu0 %v2155
        %2484 = vmatprep.subr.bf16.mxu0 %v2216
        %2485 = vmatpush2.bf16.msra.mxu0 %v2215
        %2486 = vmatprep.subr.bf16.mxu0 %v2212
        %2487 = vmatpush2.bf16.msra.mxu0 %v2211
        %2488 = vmatprep.subr.bf16.mxu0 %v2208
        %2489 = vmatpush2.bf16.msra.mxu0 %v2207
        %2490 = vmatprep.subr.bf16.mxu0 %v2204
        %2491 = vmatpush2.bf16.msra.mxu0 %v2203
        %2492 = vmatprep.subr.bf16.mxu0 %v2200
        %2493 = vmatpush2.bf16.msra.mxu0 %v2199
        %2494 = vmatprep.subr.bf16.mxu0 %v2196
        %2495 = vmatpush2.bf16.msra.mxu0 %v2195
        %2496 = vmatprep.subr.bf16.mxu0 %v2192
        %2497 = vmatpush2.bf16.msra.mxu0 %v2191
        %2498 = vmatprep.subr.bf16.mxu0 %v2188
        %2499 = vmatpush2.bf16.msra.mxu0 %v2187
        %2500 = vmatprep.mubr.bf16.mxu0 %v1554
        %2501 = vmatmul.mubr.bf16.gmra.mxu0 %v1553
        %v2502 = vpop.f32.mrf.mxu0
        %v2503 = vadd.f32 %v2462, %v2502
        %v2504 = vpop.f32.mrf.mxu0
        %v2505 = vadd.f32 %v2464, %v2504
        %v2506 = vpop.f32.mrf.mxu0
        %v2507 = vpop.f32.mrf.mxu0
        %2508 = vdwg.mxu0
        %v2509 = vsub.f32 0.0, %v2421
        %v2510 = vsub.f32 0.0, %v2423
        %v2511 = vsub.f32 0.0, %v2503
        %v2512 = vsub.f32 0.0, %v2505
        %v2513 = vmul.f32 %v2509, 1.442695
        %v2514 = vpow.pop %v2513
        %v2515 = vmul.f32 %v2510, 1.442695
        %v2516 = vpow.pop %v2515
        %v2517 = vmul.f32 %v2511, 1.442695
        %v2518 = vpow.pop %v2517
        %v2519 = vmul.f32 %v2512, 1.442695
        %v2520 = vpow.pop %v2519
        %v2521 = vadd.f32 %v2514, 1.0
        %v2522 = vadd.f32 %v2516, 1.0
        %v2523 = vadd.f32 %v2518, 1.0
        %v2524 = vadd.f32 %v2520, 1.0
        %v2525 = vrcp.pop %v2521
        %v2526 = vrcp.pop %v2522
        %v2527 = vrcp.pop %v2523
        %v2528 = vrcp.pop %v2524
        %v2529 = vmul.f32 %v2421, %v2525
        %v2530 = vmul.f32 %v2423, %v2526
        %v2531 = vmul.f32 %v2503, %v2527
        %v2532 = vmul.f32 %v2505, %v2528
        %v2533 = vpack.c.bf16 %v2529, %v2529
        %v2534 = vpack.c.bf16 %v2530, %v2530
        %v2535 = vpack.c.bf16 %v2531, %v2531
        %v2536 = vpack.c.bf16 %v2532, %v2532
        %v2537 = vld [vmem:[#allocation7] sm:$0xf]
        %v2538 = vld [vmem:[#allocation7 + $0x4] sm:$0xf]
        %v2539 = vld [vmem:[#allocation7 + $0x8] sm:$0xf]
        %v2540 = vld [vmem:[#allocation7 + $0xc] sm:$0xf]
        %v2541 = vld [vmem:[#allocation7 + $0x10] sm:$0xf]
        %v2542 = vld [vmem:[#allocation7 + $0x14] sm:$0xf]
        %v2543 = vld [vmem:[#allocation7 + $0x18] sm:$0xf]
        %v2544 = vld [vmem:[#allocation7 + $0x1c] sm:$0xf]
        %v2545 = vld [vmem:[#allocation7 + $0x20] sm:$0xf]
        %v2546 = vld [vmem:[#allocation7 + $0x24] sm:$0xf]
        %v2547 = vld [vmem:[#allocation7 + $0x28] sm:$0xf]
        %v2548 = vld [vmem:[#allocation7 + $0x2c] sm:$0xf]
        %v2549 = vld [vmem:[#allocation7 + $0x30] sm:$0xf]
        %v2550 = vld [vmem:[#allocation7 + $0x34] sm:$0xf]
        %v2551 = vld [vmem:[#allocation7 + $0x38] sm:$0xf]
        %v2552 = vld [vmem:[#allocation7 + $0x3c] sm:$0xf]
        %v2553 = vld [vmem:[#allocation7 + $0x40] sm:$0xf]
        %v2554 = vld [vmem:[#allocation7 + $0x44] sm:$0xf]
        %v2555 = vld [vmem:[#allocation7 + $0x48] sm:$0xf]
        %v2556 = vld [vmem:[#allocation7 + $0x4c] sm:$0xf]
        %v2557 = vld [vmem:[#allocation7 + $0x50] sm:$0xf]
        %v2558 = vld [vmem:[#allocation7 + $0x54] sm:$0xf]
        %v2559 = vld [vmem:[#allocation7 + $0x58] sm:$0xf]
        %v2560 = vld [vmem:[#allocation7 + $0x5c] sm:$0xf]
        %v2561 = vld [vmem:[#allocation7 + $0x60] sm:$0xf]
        %v2562 = vld [vmem:[#allocation7 + $0x64] sm:$0xf]
        %v2563 = vld [vmem:[#allocation7 + $0x68] sm:$0xf]
        %v2564 = vld [vmem:[#allocation7 + $0x6c] sm:$0xf]
        %v2565 = vld [vmem:[#allocation7 + $0x70] sm:$0xf]
        %v2566 = vld [vmem:[#allocation7 + $0x74] sm:$0xf]
        %v2567 = vld [vmem:[#allocation7 + $0x78] sm:$0xf]
        %v2568 = vld [vmem:[#allocation7 + $0x7c] sm:$0xf]
        %v2569 = vld [vmem:[#allocation7 + $0x80] sm:$0xf]
        %v2570 = vld [vmem:[#allocation7 + $0x84] sm:$0xf]
        %v2571 = vld [vmem:[#allocation7 + $0x88] sm:$0xf]
        %v2572 = vld [vmem:[#allocation7 + $0x8c] sm:$0xf]
        %v2573 = vld [vmem:[#allocation7 + $0x90] sm:$0xf]
        %v2574 = vld [vmem:[#allocation7 + $0x94] sm:$0xf]
        %v2575 = vld [vmem:[#allocation7 + $0x98] sm:$0xf]
        %v2576 = vld [vmem:[#allocation7 + $0x9c] sm:$0xf]
        %v2577 = vld [vmem:[#allocation7 + $0xa0] sm:$0xf]
        %v2578 = vld [vmem:[#allocation7 + $0xa4] sm:$0xf]
        %v2579 = vld [vmem:[#allocation7 + $0xa8] sm:$0xf]
        %v2580 = vld [vmem:[#allocation7 + $0xac] sm:$0xf]
        %v2581 = vld [vmem:[#allocation7 + $0xb0] sm:$0xf]
        %v2582 = vld [vmem:[#allocation7 + $0xb4] sm:$0xf]
        %v2583 = vld [vmem:[#allocation7 + $0xb8] sm:$0xf]
        %v2584 = vld [vmem:[#allocation7 + $0xbc] sm:$0xf]
        %v2585 = vld [vmem:[#allocation7 + $0xc0] sm:$0xf]
        %v2586 = vld [vmem:[#allocation7 + $0xc4] sm:$0xf]
        %v2587 = vld [vmem:[#allocation7 + $0xc8] sm:$0xf]
        %v2588 = vld [vmem:[#allocation7 + $0xcc] sm:$0xf]
        %v2589 = vld [vmem:[#allocation7 + $0xd0] sm:$0xf]
        %v2590 = vld [vmem:[#allocation7 + $0xd4] sm:$0xf]
        %v2591 = vld [vmem:[#allocation7 + $0xd8] sm:$0xf]
        %v2592 = vld [vmem:[#allocation7 + $0xdc] sm:$0xf]
        %v2593 = vld [vmem:[#allocation7 + $0xe0] sm:$0xf]
        %v2594 = vld [vmem:[#allocation7 + $0xe4] sm:$0xf]
        %v2595 = vld [vmem:[#allocation7 + $0xe8] sm:$0xf]
        %v2596 = vld [vmem:[#allocation7 + $0xec] sm:$0xf]
        %v2597 = vld [vmem:[#allocation7 + $0xf0] sm:$0xf]
        %v2598 = vld [vmem:[#allocation7 + $0xf4] sm:$0xf]
        %v2599 = vld [vmem:[#allocation7 + $0xf8] sm:$0xf]
        %v2600 = vld [vmem:[#allocation7 + $0xfc] sm:$0xf]
        %v2601 = vld [vmem:[%s8] sm:$0x1]
        %v2603 = vlaneseq
        %v2604 = vshrl.u32 %v2603, 7
        %v2605 = vsub.s32 0, %v2604
        %v2606 = vrot.slane %v2601, %v2605
        %v2672 = vunpack.c.l.b16 %v2537
        %v2673 = vunpack.c.l.b16 %v2538
        %v2674 = vunpack.c.l.b16 %v2539
        %v2675 = vunpack.c.l.b16 %v2540
        %v2676 = vunpack.c.l.b16 %v2541
        %v2677 = vunpack.c.l.b16 %v2542
        %v2678 = vunpack.c.l.b16 %v2543
        %v2679 = vunpack.c.l.b16 %v2544
        %v2680 = vunpack.c.l.b16 %v2545
        %v2681 = vunpack.c.l.b16 %v2546
        %v2682 = vunpack.c.l.b16 %v2547
        %v2683 = vunpack.c.l.b16 %v2548
        %v2684 = vunpack.c.l.b16 %v2549
        %v2685 = vunpack.c.l.b16 %v2550
        %v2686 = vunpack.c.l.b16 %v2551
        %v2687 = vunpack.c.l.b16 %v2552
        %v2688 = vunpack.c.l.b16 %v2553
        %v2689 = vunpack.c.l.b16 %v2554
        %v2690 = vunpack.c.l.b16 %v2555
        %v2691 = vunpack.c.l.b16 %v2556
        %v2692 = vunpack.c.l.b16 %v2557
        %v2693 = vunpack.c.l.b16 %v2558
        %v2694 = vunpack.c.l.b16 %v2559
        %v2695 = vunpack.c.l.b16 %v2560
        %v2696 = vunpack.c.l.b16 %v2561
        %v2697 = vunpack.c.l.b16 %v2562
        %v2698 = vunpack.c.l.b16 %v2563
        %v2699 = vunpack.c.l.b16 %v2564
        %v2700 = vunpack.c.l.b16 %v2565
        %v2701 = vunpack.c.l.b16 %v2566
        %v2702 = vunpack.c.l.b16 %v2567
        %v2703 = vunpack.c.l.b16 %v2568
        %v2704 = vunpack.c.l.b16 %v2569
        %v2705 = vunpack.c.l.b16 %v2570
        %v2706 = vunpack.c.l.b16 %v2571
        %v2707 = vunpack.c.l.b16 %v2572
        %v2708 = vunpack.c.l.b16 %v2573
        %v2709 = vunpack.c.l.b16 %v2574
        %v2710 = vunpack.c.l.b16 %v2575
        %v2711 = vunpack.c.l.b16 %v2576
        %v2712 = vunpack.c.l.b16 %v2577
        %v2713 = vunpack.c.l.b16 %v2578
        %v2714 = vunpack.c.l.b16 %v2579
        %v2715 = vunpack.c.l.b16 %v2580
        %v2716 = vunpack.c.l.b16 %v2581
        %v2717 = vunpack.c.l.b16 %v2582
        %v2718 = vunpack.c.l.b16 %v2583
        %v2719 = vunpack.c.l.b16 %v2584
        %v2720 = vunpack.c.l.b16 %v2585
        %v2721 = vunpack.c.l.b16 %v2586
        %v2722 = vunpack.c.l.b16 %v2587
        %v2723 = vunpack.c.l.b16 %v2588
        %v2724 = vunpack.c.l.b16 %v2589
        %v2725 = vunpack.c.l.b16 %v2590
        %v2726 = vunpack.c.l.b16 %v2591
        %v2727 = vunpack.c.l.b16 %v2592
        %v2728 = vunpack.c.l.b16 %v2593
        %v2729 = vunpack.c.l.b16 %v2594
        %v2730 = vunpack.c.l.b16 %v2595
        %v2731 = vunpack.c.l.b16 %v2596
        %v2732 = vunpack.c.l.b16 %v2597
        %v2733 = vunpack.c.l.b16 %v2598
        %v2734 = vunpack.c.l.b16 %v2599
        %v2735 = vunpack.c.l.b16 %v2600
        %v2736 = vpack.c.b16 %v2673, %v2672
        %v2737 = vpack.c.b16 %v2675, %v2674
        %v2738 = vpack.c.b16 %v2677, %v2676
        %v2739 = vpack.c.b16 %v2679, %v2678
        %v2740 = vpack.c.b16 %v2681, %v2680
        %v2741 = vpack.c.b16 %v2683, %v2682
        %v2742 = vpack.c.b16 %v2685, %v2684
        %v2743 = vpack.c.b16 %v2687, %v2686
        %v2744 = vpack.c.b16 %v2689, %v2688
        %v2745 = vpack.c.b16 %v2691, %v2690
        %v2746 = vpack.c.b16 %v2693, %v2692
        %v2747 = vpack.c.b16 %v2695, %v2694
        %v2748 = vpack.c.b16 %v2697, %v2696
        %v2749 = vpack.c.b16 %v2699, %v2698
        %v2750 = vpack.c.b16 %v2701, %v2700
        %v2751 = vpack.c.b16 %v2703, %v2702
        %v2752 = vpack.c.b16 %v2705, %v2704
        %v2753 = vpack.c.b16 %v2707, %v2706
        %v2754 = vpack.c.b16 %v2709, %v2708
        %v2755 = vpack.c.b16 %v2711, %v2710
        %v2756 = vpack.c.b16 %v2713, %v2712
        %v2757 = vpack.c.b16 %v2715, %v2714
        %v2758 = vpack.c.b16 %v2717, %v2716
        %v2759 = vpack.c.b16 %v2719, %v2718
        %v2760 = vpack.c.b16 %v2721, %v2720
        %v2761 = vpack.c.b16 %v2723, %v2722
        %v2762 = vpack.c.b16 %v2725, %v2724
        %v2763 = vpack.c.b16 %v2727, %v2726
        %v2764 = vpack.c.b16 %v2729, %v2728
        %v2765 = vpack.c.b16 %v2731, %v2730
        %v2766 = vpack.c.b16 %v2733, %v2732
        %v2767 = vpack.c.b16 %v2735, %v2734
        %2800 = vmatprep.subr.bf16.mxu0 0
        %2801 = vmatpush1.bf16.msra.mxu0 %v2743
        %2802 = vmatprep.subr.bf16.mxu0 0
        %2803 = vmatpush1.bf16.msra.mxu0 %v2742
        %2804 = vmatprep.subr.bf16.mxu0 0
        %2805 = vmatpush1.bf16.msra.mxu0 %v2741
        %2806 = vmatprep.subr.bf16.mxu0 0
        %2807 = vmatpush1.bf16.msra.mxu0 %v2740
        %2808 = vmatprep.subr.bf16.mxu0 0
        %2809 = vmatpush1.bf16.msra.mxu0 %v2739
        %2810 = vmatprep.subr.bf16.mxu0 0
        %2811 = vmatpush1.bf16.msra.mxu0 %v2738
        %2812 = vmatprep.subr.bf16.mxu0 0
        %2813 = vmatpush1.bf16.msra.mxu0 %v2737
        %2814 = vmatprep.subr.bf16.mxu0 0
        %2815 = vmatpush1.bf16.msra.mxu0 %v2736
        %2816 = vmatprep.subr.bf16.mxu0 0
        %2817 = vmatpush2.bf16.msra.mxu0 %v2751
        %2818 = vmatprep.subr.bf16.mxu0 0
        %2819 = vmatpush2.bf16.msra.mxu0 %v2750
        %2820 = vmatprep.subr.bf16.mxu0 0
        %2821 = vmatpush2.bf16.msra.mxu0 %v2749
        %2822 = vmatprep.subr.bf16.mxu0 0
        %2823 = vmatpush2.bf16.msra.mxu0 %v2748
        %2824 = vmatprep.subr.bf16.mxu0 0
        %2825 = vmatpush2.bf16.msra.mxu0 %v2747
        %2826 = vmatprep.subr.bf16.mxu0 0
        %2827 = vmatpush2.bf16.msra.mxu0 %v2746
        %2828 = vmatprep.subr.bf16.mxu0 0
        %2829 = vmatpush2.bf16.msra.mxu0 %v2745
        %2830 = vmatprep.subr.bf16.mxu0 0
        %2831 = vmatpush2.bf16.msra.mxu0 %v2744
        %2832 = vmatprep.mubr.bf16.mxu0 %v2534
        %2833 = vmatmul.mubr.bf16.gmra.mxu0 %v2533
        %v2834 = vpop.f32.mrf.mxu0
        %v2835 = vadd.f32 %v2606, %v2834
        %v2836 = vpop.f32.mrf.mxu0
        %v2837 = vpop.f32.mrf.mxu0
        %v2838 = vpop.f32.mrf.mxu0
        %2839 = vdwg.mxu0
        %2840 = vmatprep.subr.bf16.mxu0 0
        %2841 = vmatpush1.bf16.msra.mxu0 %v2759
        %2842 = vmatprep.subr.bf16.mxu0 0
        %2843 = vmatpush1.bf16.msra.mxu0 %v2758
        %2844 = vmatprep.subr.bf16.mxu0 0
        %2845 = vmatpush1.bf16.msra.mxu0 %v2757
        %2846 = vmatprep.subr.bf16.mxu0 0
        %2847 = vmatpush1.bf16.msra.mxu0 %v2756
        %2848 = vmatprep.subr.bf16.mxu0 0
        %2849 = vmatpush1.bf16.msra.mxu0 %v2755
        %2850 = vmatprep.subr.bf16.mxu0 0
        %2851 = vmatpush1.bf16.msra.mxu0 %v2754
        %2852 = vmatprep.subr.bf16.mxu0 0
        %2853 = vmatpush1.bf16.msra.mxu0 %v2753
        %2854 = vmatprep.subr.bf16.mxu0 0
        %2855 = vmatpush1.bf16.msra.mxu0 %v2752
        %2856 = vmatprep.subr.bf16.mxu0 0
        %2857 = vmatpush2.bf16.msra.mxu0 %v2767
        %2858 = vmatprep.subr.bf16.mxu0 0
        %2859 = vmatpush2.bf16.msra.mxu0 %v2766
        %2860 = vmatprep.subr.bf16.mxu0 0
        %2861 = vmatpush2.bf16.msra.mxu0 %v2765
        %2862 = vmatprep.subr.bf16.mxu0 0
        %2863 = vmatpush2.bf16.msra.mxu0 %v2764
        %2864 = vmatprep.subr.bf16.mxu0 0
        %2865 = vmatpush2.bf16.msra.mxu0 %v2763
        %2866 = vmatprep.subr.bf16.mxu0 0
        %2867 = vmatpush2.bf16.msra.mxu0 %v2762
        %2868 = vmatprep.subr.bf16.mxu0 0
        %2869 = vmatpush2.bf16.msra.mxu0 %v2761
        %2870 = vmatprep.subr.bf16.mxu0 0
        %2871 = vmatpush2.bf16.msra.mxu0 %v2760
        %2872 = vmatprep.mubr.bf16.mxu0 %v2536
        %2873 = vmatmul.mubr.bf16.gmra.mxu0 %v2535
        %v2874 = vpop.f32.mrf.mxu0
        %v2875 = vadd.f32 %v2835, %v2874
        %v2876 = vpop.f32.mrf.mxu0
        %v2877 = vpop.f32.mrf.mxu0
        %v2878 = vpop.f32.mrf.mxu0
        %2879 = vdwg.mxu0
        %2880 = vst [vmem:[%s386] sm:$0xff] %v2875
        %p2881 = scmp.lt.s32.totalorder %s23, 2
        %s2882 = scalar_select %p2881, %s23, 2
        %s2883 = smul.addr %s2882, 8
        %s2884 = scalar_lea.vmem %s9, %s2883
        // Predicated region
        $region73: #{text_decoder.1} parent=55 // pred_check
          %p2885 = pneg %p235
        $region74: #{text_decoder.1} parent=55 // pred_check_branch
          %2887 = sbr.rel (%p2885) target = $region76
        $region75: #{text_decoder.1} parent=55 // pred_region
          _
        $region76: #{text_decoder.1} parent=55 // pred_fallthru
          _
      $region56: #{text_decoder.1} parent=5 // pred_fallthru
        _
      %p2888 = scmp.le.s32.totalorder 2, %s18
      // Predicated region
      $region77: #{text_decoder.1} parent=5 // pred_check
        %p2889 = pneg %p2888
      $region78: #{text_decoder.1} parent=5 // pred_check_branch
        %2891 = sbr.rel (%p2889) target = $region80
      $region79: #{text_decoder.1} parent=5 // pred_region
        %s2892 = ssub.s32 %s18, 2
        // Predicated region
        $region81: #{text_decoder.1} parent=79 // pred_check
          %p2893 = pneg %p241
        $region82: #{text_decoder.1} parent=79 // pred_check_branch
          %2895 = sbr.rel (%p2893) target = $region84
        $region83: #{text_decoder.1} parent=79 // pred_region
          %p2896 = scmp.lt.s32.totalorder %s24, 2
          %s2897 = scalar_select %p2896, %s24, 2
          %s2898 = smul.addr %s2897, 8
          %s2899 = scalar_lea.vmem %s9, %s2898
        $region84: #{text_decoder.1} parent=79 // pred_fallthru
          _
      $region80: #{text_decoder.1} parent=5 // pred_fallthru
        _
    $region6: #{text_decoder.1} parent=1 // loop_footer
      %s22 = sadd.s32 1, %s18
    $region7: #{text_decoder.1} parent=1 // loop_footer_branch
      %17 = sbr.rel target = $region3
    $region8: #{text_decoder.1} parent=1 // loop_exit
      _
    %2900 = vsyncpa [#allocation3], 1
    %s2901 = scalar_lea.sflag [#allocation3], 1
    %2902 = vsyncpa %s2901, 1
    %2903 = vsyncpa [#allocation5], 1
    %2904 = vsyncpa [#allocation8], 1

</llo_original>
